<compile_context>
chip_gen: v7x
topology: tpu7x:2x2x1
jax: 0.10.0
libtpu: 0.0.40
codegen_flags: <defaults>
</compile_context>

<pallas_src>
import jax
import jax.numpy as jnp
from jax.experimental import pallas as pl
from jax.experimental.pallas import tpu as pltpu

# ----------------------------- config ---------------------------------------
BATCH = 2
SEQ = 8
HIDDEN = 32
NUM_HEADS = 2
HEAD_DIM = HIDDEN // NUM_HEADS
INTERMEDIATE = 64
VOCAB = 50
NUM_LAYERS = 2
NUM_CLASSES = 4
PAD_NUM = 0
LN_EPS = 1e-12
NEG_INF = -1e9

TOKENS = BATCH * SEQ                      # 16 rows, fully VMEM resident
SMALL_W = 3 * HIDDEN                      # packed small-params width (96 lanes)
ROWS_PER_LAYER = 8                        # bqkv, bo, ln1_g, ln1_b, bff1, bff2, ln2_g, ln2_b

# Packed per-layer weight slab column offsets:  [ wqkv | wo | wff1 | wff2^T ]
_QKV0, _QKV1 = 0, 3 * HIDDEN
_WO0, _WO1 = _QKV1, _QKV1 + HIDDEN
_F10, _F11 = _WO1, _WO1 + INTERMEDIATE
_F20, _F21 = _F11, _F11 + INTERMEDIATE
LAYER_W_COLS = _F21                       # 256


# --------------------------- fused Pallas kernel -----------------------------
def _fused_bert_kernel(emb_ref, mask_ref, small_ref, layer_w_ref, head_w_ref,
                       out_ref, ctx_ref):
    scale = 1.0 / (HEAD_DIM ** 0.5)

    def ln(x, g, b):
        mu = jnp.mean(x, axis=-1, keepdims=True)
        var = jnp.mean(jnp.square(x - mu), axis=-1, keepdims=True)
        return (x - mu) * jax.lax.rsqrt(var + LN_EPS) * g + b

    # Combined block-diagonal batch mask + key-padding bias; loaded once and
    # reused by every layer/head (no broadcasts re-emitted inside the loops).
    mask = mask_ref[...]                                            # (B*S, B*S) f32

    # Embedding layernorm.
    x = ln(emb_ref[...], small_ref[0:1, :HIDDEN], small_ref[1:2, :HIDDEN])

    # Transformer layers (static unroll; all weights resident in VMEM).
    for l in range(NUM_LAYERS):
        base = 4 + l * ROWS_PER_LAYER
        wl = layer_w_ref[l]                                         # (H, 256) bf16
        w_qkv = wl[:, _QKV0:_QKV1]                                  # (H, 3H)
        w_o = wl[:, _WO0:_WO1]                                      # (H, H)
        w_ff1 = wl[:, _F10:_F11]                                    # (H, I)
        w_ff2t = wl[:, _F20:_F21]                                   # (H, I) == wff2^T

        b_qkv = small_ref[base + 0:base + 1, :3 * HIDDEN]
        b_o = small_ref[base + 1:base + 2, :HIDDEN]
        ln1_g = small_ref[base + 2:base + 3, :HIDDEN]
        ln1_b = small_ref[base + 3:base + 4, :HIDDEN]
        b_ff1 = small_ref[base + 4:base + 5, :INTERMEDIATE]
        b_ff2 = small_ref[base + 5:base + 6, :HIDDEN]
        ln2_g = small_ref[base + 6:base + 7, :HIDDEN]
        ln2_b = small_ref[base + 7:base + 8, :HIDDEN]

        # Fused QKV projection on the whole (B*S, H) slab.
        qkv = jnp.dot(x.astype(jnp.bfloat16), w_qkv,
                      preferred_element_type=jnp.float32) + b_qkv   # (B*S, 3H) f32

        # Per-head attention over all B*S rows at once; the block-diagonal mask
        # keeps batches independent.  Head outputs go straight into a VMEM
        # scratch slab via lane-sliced stores (no concatenation).
        for h in range(NUM_HEADS):
            c0 = h * HEAD_DIM
            qh = qkv[:, c0:c0 + HEAD_DIM].astype(jnp.bfloat16)
            kh = qkv[:, HIDDEN + c0:HIDDEN + c0 + HEAD_DIM].astype(jnp.bfloat16)
            vh = qkv[:, 2 * HIDDEN + c0:2 * HIDDEN + c0 + HEAD_DIM].astype(jnp.bfloat16)
            s = jax.lax.dot_general(qh, kh, (((1,), (1,)), ((), ())),
                                    preferred_element_type=jnp.float32) * scale + mask
            m = jnp.max(s, axis=-1, keepdims=True)
            p = jnp.exp(s - m)
            p = p * pl.reciprocal(jnp.sum(p, axis=-1, keepdims=True), approx=True)
            ctx_ref[:, c0:c0 + HEAD_DIM] = jnp.dot(
                p.astype(jnp.bfloat16), vh, preferred_element_type=jnp.float32)

        attn_out = jnp.dot(ctx_ref[...].astype(jnp.bfloat16), w_o,
                           preferred_element_type=jnp.float32) + b_o
        x = ln(attn_out + x, ln1_g, ln1_b)

        ff = jnp.dot(x.astype(jnp.bfloat16), w_ff1,
                     preferred_element_type=jnp.float32) + b_ff1
        # TODO(synk): HF BERT uses exact (erf) GELU; tanh approximation used here.
        ff = jax.nn.gelu(ff, approximate=True)
        ff2 = jax.lax.dot_general(ff.astype(jnp.bfloat16), w_ff2t,
                                  (((1,), (1,)), ((), ())),
                                  preferred_element_type=jnp.float32) + b_ff2
        x = ln(ff2 + x, ln2_g, ln2_b)

    # Pooler + classifier on CLS rows only; single contiguous output store.
    x_cls = jnp.concatenate([x[b * SEQ:b * SEQ + 1, :] for b in range(BATCH)], axis=0)
    pooled = jnp.tanh(
        jnp.dot(x_cls.astype(jnp.bfloat16), head_w_ref[:, 0:HIDDEN],
                preferred_element_type=jnp.float32) + small_ref[2:3, :HIDDEN])
    logits = jax.nn.sigmoid(
        jnp.dot(pooled.astype(jnp.bfloat16),
                head_w_ref[:, HIDDEN:HIDDEN + NUM_CLASSES],
                preferred_element_type=jnp.float32) + small_ref[3:4, :NUM_CLASSES])
    out_ref[...] = logits


def _full_spec(shape):
    nd = len(shape)
    return pl.BlockSpec(shape, lambda i, _nd=nd: (0,) * _nd)


# --------------------------- parameter packing -------------------------------
def _pack_small(params):
    """Stack all tiny bias / LayerNorm vectors into one (4 + 8L, 96) f32 array."""
    def row(v):
        v = v.reshape(-1).astype(jnp.float32)
        return jnp.pad(v, (0, SMALL_W - v.shape[0]))[None, :]

    rows = [row(params["emb_ln_g"]), row(params["emb_ln_b"]),
            row(params["pool_b"]), row(params["cls_b"])]
    for l in range(NUM_LAYERS):
        rows += [row(params["bqkv"][l]), row(params["bo"][l]),
                 row(params["ln1_g"][l]), row(params["ln1_b"][l]),
                 row(params["bff1"][l]), row(params["bff2"][l]),
                 row(params["ln2_g"][l]), row(params["ln2_b"][l])]
    return jnp.concatenate(rows, axis=0)                            # (20, 96)


def _pack_layer_w(params):
    """(L, H, 3H + H + I + I) bf16 slab: [wqkv | wo | wff1 | wff2^T]."""
    wff2_t = jnp.swapaxes(params["wff2"], 1, 2)                     # (L, H, I)
    return jnp.concatenate(
        [params["wqkv"], params["wo"], params["wff1"], wff2_t],
        axis=2).astype(jnp.bfloat16)                                # (L, 32, 256)


def _pack_head_w(params):
    """(H, H + C) bf16 slab: [pool_w | cls_w]."""
    return jnp.concatenate([params["pool_w"], params["cls_w"]],
                           axis=1).astype(jnp.bfloat16)             # (32, 36)


# --------------------------- model (JAX glue) --------------------------------
def init_params(key):
    def nrm(k, shape):
        return jax.random.normal(k, shape, dtype=jnp.float32) * 0.02

    keys = jax.random.split(key, 9)
    L, H, I, C = NUM_LAYERS, HIDDEN, INTERMEDIATE, NUM_CLASSES
    return {
        "word_emb": nrm(keys[0], (VOCAB, H)),
        "pos_emb": nrm(keys[1], (SEQ, H)),
        "type_emb": nrm(keys[2], (2, H)),
        "emb_ln_g": jnp.ones((1, H), jnp.float32),
        "emb_ln_b": jnp.zeros((1, H), jnp.float32),
        "wqkv": nrm(keys[3], (L, H, 3 * H)),
        "bqkv": jnp.zeros((L, 1, 3 * H), jnp.float32),
        "wo": nrm(keys[4], (L, H, H)),
        "bo": jnp.zeros((L, 1, H), jnp.float32),
        "ln1_g": jnp.ones((L, 1, H), jnp.float32),
        "ln1_b": jnp.zeros((L, 1, H), jnp.float32),
        "wff1": nrm(keys[5], (L, H, I)),
        "bff1": jnp.zeros((L, 1, I), jnp.float32),
        "wff2": nrm(keys[6], (L, I, H)),
        "bff2": jnp.zeros((L, 1, H), jnp.float32),
        "ln2_g": jnp.ones((L, 1, H), jnp.float32),
        "ln2_b": jnp.zeros((L, 1, H), jnp.float32),
        "pool_w": nrm(keys[7], (H, H)),
        "pool_b": jnp.zeros((1, H), jnp.float32),
        "cls_w": nrm(keys[8], (H, C)),
        "cls_b": jnp.zeros((1, C), jnp.float32),
    }


@jax.jit
def custom_model_forward(params, input_ids):
    """Equivalent of CustomModel.forward(input_ids) in eval mode."""
    B, S = input_ids.shape

    # get_attn_mask: key-padding bias, combined with a block-diagonal batch mask
    # so attention over the flattened (B*S) slab stays batch-local.
    key_bias = jnp.where(input_ids == PAD_NUM, NEG_INF, 0.0).astype(jnp.float32)
    key_bias = key_bias.reshape(B * S)                               # (B*S,)
    batch_ids = jnp.arange(B * S, dtype=jnp.int32) // S
    full_bias = jnp.where(batch_ids[:, None] == batch_ids[None, :],
                          key_bias[None, :], NEG_INF)                # (B*S, B*S)

    # Embedding gather is glue (XLA); everything after it runs in one Pallas call.
    emb = (jnp.take(params["word_emb"], input_ids, axis=0)
           + params["pos_emb"][None, :S, :]
           + params["type_emb"][0][None, None, :]).reshape(B * S, HIDDEN)

    inputs = (emb, full_bias, _pack_small(params),
              _pack_layer_w(params), _pack_head_w(params))

    return pl.pallas_call(
        _fused_bert_kernel,
        out_shape=jax.ShapeDtypeStruct((B, NUM_CLASSES), jnp.float32),
        grid=(1,),
        in_specs=[_full_spec(a.shape) for a in inputs],
        out_specs=_full_spec((B, NUM_CLASSES)),
        scratch_shapes=[pltpu.VMEM((TOKENS, HIDDEN), jnp.float32)],  # attn ctx slab
        compiler_params=pltpu.CompilerParams(
            dimension_semantics=("arbitrary",)),   # single TC; no cross-core split
    )(*inputs)


if __name__ == "__main__":
    key = jax.random.PRNGKey(0)
    pkey, ikey = jax.random.split(key)
    params = init_params(pkey)

    input_ids = jax.random.randint(ikey, (BATCH, SEQ), 1, VOCAB, dtype=jnp.int32)
    # Pad the tail of batch element 1 to exercise the attention mask path.
    input_ids = input_ids.at[1, -2:].set(PAD_NUM)

    out = custom_model_forward(params, input_ids)
    jax.block_until_ready(out)
    assert out.shape == (BATCH, NUM_CLASSES)
    assert bool(jnp.all((out >= 0.0) & (out <= 1.0)))
    print("KERNEL_OK")
</pallas_src>

<mosaic_0001>
module attributes {stable_mosaic.version = 11 : i64} {
  func.func @_fused_bert_kernel(%arg0: i32, %arg1: memref<16x32xf32, #tpu.memory_space<vmem>>, %arg2: memref<16x16xf32, #tpu.memory_space<vmem>>, %arg3: memref<20x96xf32, #tpu.memory_space<vmem>>, %arg4: memref<2x32x256xbf16, #tpu.memory_space<vmem>>, %arg5: memref<32x36xbf16, #tpu.memory_space<vmem>>, %arg6: memref<2x4xf32, #tpu.memory_space<vmem>>, %arg7: memref<16x32xf32, #tpu.memory_space<vmem>>) attributes {dimension_semantics = [#tpu.dimension_semantics<arbitrary>], iteration_bounds = array<i64: 1>, scalar_prefetch = 0 : i64, scratch_operands = 1 : i64, tpu.core_type = #tpu.core_type<tc>, window_params = [{pipeline_mode = #tpu.pipeline_mode<synchronous>, transform_indices = @transform_0, window_bounds = array<i64: 16, 32>}, {pipeline_mode = #tpu.pipeline_mode<synchronous>, transform_indices = @transform_1, window_bounds = array<i64: 16, 16>}, {pipeline_mode = #tpu.pipeline_mode<synchronous>, transform_indices = @transform_2, window_bounds = array<i64: 20, 96>}, {pipeline_mode = #tpu.pipeline_mode<synchronous>, transform_indices = @transform_3, window_bounds = array<i64: 2, 32, 256>}, {pipeline_mode = #tpu.pipeline_mode<synchronous>, transform_indices = @transform_4, window_bounds = array<i64: 32, 36>}, {pipeline_mode = #tpu.pipeline_mode<synchronous>, transform_indices = @transform_5, window_bounds = array<i64: 2, 4>}]} {
    %c0 = arith.constant 0 : index
    %c0_0 = arith.constant 0 : index
    %0 = vector.load %arg2[%c0, %c0_0] : memref<16x16xf32, #tpu.memory_space<vmem>>, vector<16x16xf32>
    %c0_1 = arith.constant 0 : index
    %c0_2 = arith.constant 0 : index
    %1 = vector.load %arg1[%c0_1, %c0_2] : memref<16x32xf32, #tpu.memory_space<vmem>>, vector<16x32xf32>
    %c0_3 = arith.constant 0 : index
    %c0_4 = arith.constant 0 : index
    %2 = vector.load %arg3[%c0_3, %c0_4] : memref<20x96xf32, #tpu.memory_space<vmem>>, vector<1x32xf32>
    %c1 = arith.constant 1 : index
    %c0_5 = arith.constant 0 : index
    %3 = vector.load %arg3[%c1, %c0_5] : memref<20x96xf32, #tpu.memory_space<vmem>>, vector<1x32xf32>
    %cst = arith.constant dense<0.000000e+00> : vector<16xf32>
    %4 = vector.multi_reduction <add>, %1, %cst [1] : vector<16x32xf32> to vector<16xf32>
    %5 = vector.shape_cast %4 : vector<16xf32> to vector<16x1xf32>
    %cst_6 = arith.constant 3.200000e+01 : f32
    %6 = vector.broadcast %cst_6 : f32 to vector<16x1xf32>
    %7 = arith.divf %5, %6 : vector<16x1xf32>
    %8 = vector.broadcast %7 : vector<16x1xf32> to vector<16x32xf32>
    %9 = arith.subf %1, %8 : vector<16x32xf32>
    %10 = arith.mulf %9, %9 : vector<16x32xf32>
    %cst_7 = arith.constant dense<0.000000e+00> : vector<16xf32>
    %11 = vector.multi_reduction <add>, %10, %cst_7 [1] : vector<16x32xf32> to vector<16xf32>
    %12 = vector.shape_cast %11 : vector<16xf32> to vector<16x1xf32>
    %cst_8 = arith.constant 3.200000e+01 : f32
    %13 = vector.broadcast %cst_8 : f32 to vector<16x1xf32>
    %14 = arith.divf %12, %13 : vector<16x1xf32>
    %15 = vector.broadcast %7 : vector<16x1xf32> to vector<16x32xf32>
    %16 = arith.subf %1, %15 : vector<16x32xf32>
    %cst_9 = arith.constant 9.99999996E-13 : f32
    %17 = vector.broadcast %cst_9 : f32 to vector<16x1xf32>
    %18 = arith.addf %14, %17 : vector<16x1xf32>
    %19 = math.rsqrt %18 : vector<16x1xf32>
    %20 = vector.broadcast %19 : vector<16x1xf32> to vector<16x32xf32>
    %21 = arith.mulf %16, %20 : vector<16x32xf32>
    %22 = vector.broadcast %2 : vector<1x32xf32> to vector<16x32xf32>
    %23 = arith.mulf %21, %22 : vector<16x32xf32>
    %24 = vector.broadcast %3 : vector<1x32xf32> to vector<16x32xf32>
    %25 = arith.addf %23, %24 : vector<16x32xf32>
    %c0_10 = arith.constant 0 : index
    %c0_11 = arith.constant 0 : index
    %c0_12 = arith.constant 0 : index
    %26 = vector.load %arg4[%c0_10, %c0_11, %c0_12] : memref<2x32x256xbf16, #tpu.memory_space<vmem>>, vector<1x32x256xbf16>
    %27 = vector.shape_cast %26 : vector<1x32x256xbf16> to vector<32x256xbf16>
    %28 = vector.extract_strided_slice %27 {offsets = [0, 0], sizes = [32, 96], strides = [1, 1]} : vector<32x256xbf16> to vector<32x96xbf16>
    %29 = vector.extract_strided_slice %27 {offsets = [0, 96], sizes = [32, 32], strides = [1, 1]} : vector<32x256xbf16> to vector<32x32xbf16>
    %30 = vector.extract_strided_slice %27 {offsets = [0, 128], sizes = [32, 64], strides = [1, 1]} : vector<32x256xbf16> to vector<32x64xbf16>
    %31 = vector.extract_strided_slice %27 {offsets = [0, 192], sizes = [32, 64], strides = [1, 1]} : vector<32x256xbf16> to vector<32x64xbf16>
    %c4 = arith.constant 4 : index
    %c0_13 = arith.constant 0 : index
    %32 = vector.load %arg3[%c4, %c0_13] : memref<20x96xf32, #tpu.memory_space<vmem>>, vector<1x96xf32>
    %c5 = arith.constant 5 : index
    %c0_14 = arith.constant 0 : index
    %33 = vector.load %arg3[%c5, %c0_14] : memref<20x96xf32, #tpu.memory_space<vmem>>, vector<1x32xf32>
    %c6 = arith.constant 6 : index
    %c0_15 = arith.constant 0 : index
    %34 = vector.load %arg3[%c6, %c0_15] : memref<20x96xf32, #tpu.memory_space<vmem>>, vector<1x32xf32>
    %c7 = arith.constant 7 : index
    %c0_16 = arith.constant 0 : index
    %35 = vector.load %arg3[%c7, %c0_16] : memref<20x96xf32, #tpu.memory_space<vmem>>, vector<1x32xf32>
    %c8 = arith.constant 8 : index
    %c0_17 = arith.constant 0 : index
    %36 = vector.load %arg3[%c8, %c0_17] : memref<20x96xf32, #tpu.memory_space<vmem>>, vector<1x64xf32>
    %c9 = arith.constant 9 : index
    %c0_18 = arith.constant 0 : index
    %37 = vector.load %arg3[%c9, %c0_18] : memref<20x96xf32, #tpu.memory_space<vmem>>, vector<1x32xf32>
    %c10 = arith.constant 10 : index
    %c0_19 = arith.constant 0 : index
    %38 = vector.load %arg3[%c10, %c0_19] : memref<20x96xf32, #tpu.memory_space<vmem>>, vector<1x32xf32>
    %c11 = arith.constant 11 : index
    %c0_20 = arith.constant 0 : index
    %39 = vector.load %arg3[%c11, %c0_20] : memref<20x96xf32, #tpu.memory_space<vmem>>, vector<1x32xf32>
    %40 = arith.truncf %25 : vector<16x32xf32> to vector<16x32xbf16>
    %cst_21 = arith.constant dense<0.000000e+00> : vector<16x96xf32>
    %41 = tpu.matmul %40, %28, %cst_21 {dimension_numbers = #tpu.dot_dimension_numbers<[1], [0], [0], [1], [0, 0, 1, 1], [], []>} : vector<16x32xbf16>, vector<32x96xbf16>, vector<16x96xf32> -> vector<16x96xf32>
    %42 = vector.broadcast %32 : vector<1x96xf32> to vector<16x96xf32>
    %43 = arith.addf %41, %42 : vector<16x96xf32>
    %44 = vector.extract_strided_slice %43 {offsets = [0, 0], sizes = [16, 16], strides = [1, 1]} : vector<16x96xf32> to vector<16x16xf32>
    %45 = arith.truncf %44 : vector<16x16xf32> to vector<16x16xbf16>
    %46 = vector.extract_strided_slice %43 {offsets = [0, 32], sizes = [16, 16], strides = [1, 1]} : vector<16x96xf32> to vector<16x16xf32>
    %47 = arith.truncf %46 : vector<16x16xf32> to vector<16x16xbf16>
    %48 = vector.extract_strided_slice %43 {offsets = [0, 64], sizes = [16, 16], strides = [1, 1]} : vector<16x96xf32> to vector<16x16xf32>
    %49 = arith.truncf %48 : vector<16x16xf32> to vector<16x16xbf16>
    %cst_22 = arith.constant dense<0.000000e+00> : vector<16x16xf32>
    %50 = tpu.matmul %45, %47, %cst_22 {dimension_numbers = #tpu.dot_dimension_numbers<[1], [1], [0], [0], [0, 0, 1, 0], [], []>} : vector<16x16xbf16>, vector<16x16xbf16>, vector<16x16xf32> -> vector<16x16xf32>
    %cst_23 = arith.constant 2.500000e-01 : f32
    %51 = vector.broadcast %cst_23 : f32 to vector<16x16xf32>
    %52 = arith.mulf %50, %51 : vector<16x16xf32>
    %53 = arith.addf %52, %0 : vector<16x16xf32>
    %cst_24 = arith.constant dense<0xFF800000> : vector<16xf32>
    %54 = vector.multi_reduction <maximumf>, %53, %cst_24 [1] : vector<16x16xf32> to vector<16xf32>
    %55 = vector.shape_cast %54 : vector<16xf32> to vector<16x1xf32>
    %56 = vector.broadcast %55 : vector<16x1xf32> to vector<16x16xf32>
    %57 = arith.subf %53, %56 : vector<16x16xf32>
    %58 = math.exp %57 : vector<16x16xf32>
    %cst_25 = arith.constant dense<0.000000e+00> : vector<16xf32>
    %59 = vector.multi_reduction <add>, %58, %cst_25 [1] : vector<16x16xf32> to vector<16xf32>
    %60 = vector.shape_cast %59 : vector<16xf32> to vector<16x1xf32>
    %61 = tpu.reciprocal %60 {approx = true} : vector<16x1xf32> -> vector<16x1xf32>
    %62 = vector.broadcast %61 : vector<16x1xf32> to vector<16x16xf32>
    %63 = arith.mulf %58, %62 : vector<16x16xf32>
    %64 = arith.truncf %63 : vector<16x16xf32> to vector<16x16xbf16>
    %cst_26 = arith.constant dense<0.000000e+00> : vector<16x16xf32>
    %65 = tpu.matmul %64, %49, %cst_26 {dimension_numbers = #tpu.dot_dimension_numbers<[1], [0], [0], [1], [0, 0, 1, 1], [], []>} : vector<16x16xbf16>, vector<16x16xbf16>, vector<16x16xf32> -> vector<16x16xf32>
    %c0_27 = arith.constant 0 : index
    %c0_28 = arith.constant 0 : index
    %66 = vector.load %arg7[%c0_27, %c0_28] : memref<16x32xf32, #tpu.memory_space<vmem>>, vector<16x16xf32>
    tpu.vector_store %arg7[%c0_27, %c0_28], %65 {strides = array<i32>} : memref<16x32xf32, #tpu.memory_space<vmem>>, vector<16x16xf32>,
    %67 = vector.extract_strided_slice %43 {offsets = [0, 16], sizes = [16, 16], strides = [1, 1]} : vector<16x96xf32> to vector<16x16xf32>
    %68 = arith.truncf %67 : vector<16x16xf32> to vector<16x16xbf16>
    %69 = vector.extract_strided_slice %43 {offsets = [0, 48], sizes = [16, 16], strides = [1, 1]} : vector<16x96xf32> to vector<16x16xf32>
    %70 = arith.truncf %69 : vector<16x16xf32> to vector<16x16xbf16>
    %71 = vector.extract_strided_slice %43 {offsets = [0, 80], sizes = [16, 16], strides = [1, 1]} : vector<16x96xf32> to vector<16x16xf32>
    %72 = arith.truncf %71 : vector<16x16xf32> to vector<16x16xbf16>
    %cst_29 = arith.constant dense<0.000000e+00> : vector<16x16xf32>
    %73 = tpu.matmul %68, %70, %cst_29 {dimension_numbers = #tpu.dot_dimension_numbers<[1], [1], [0], [0], [0, 0, 1, 0], [], []>} : vector<16x16xbf16>, vector<16x16xbf16>, vector<16x16xf32> -> vector<16x16xf32>
    %cst_30 = arith.constant 2.500000e-01 : f32
    %74 = vector.broadcast %cst_30 : f32 to vector<16x16xf32>
    %75 = arith.mulf %73, %74 : vector<16x16xf32>
    %76 = arith.addf %75, %0 : vector<16x16xf32>
    %cst_31 = arith.constant dense<0xFF800000> : vector<16xf32>
    %77 = vector.multi_reduction <maximumf>, %76, %cst_31 [1] : vector<16x16xf32> to vector<16xf32>
    %78 = vector.shape_cast %77 : vector<16xf32> to vector<16x1xf32>
    %79 = vector.broadcast %78 : vector<16x1xf32> to vector<16x16xf32>
    %80 = arith.subf %76, %79 : vector<16x16xf32>
    %81 = math.exp %80 : vector<16x16xf32>
    %cst_32 = arith.constant dense<0.000000e+00> : vector<16xf32>
    %82 = vector.multi_reduction <add>, %81, %cst_32 [1] : vector<16x16xf32> to vector<16xf32>
    %83 = vector.shape_cast %82 : vector<16xf32> to vector<16x1xf32>
    %84 = tpu.reciprocal %83 {approx = true} : vector<16x1xf32> -> vector<16x1xf32>
    %85 = vector.broadcast %84 : vector<16x1xf32> to vector<16x16xf32>
    %86 = arith.mulf %81, %85 : vector<16x16xf32>
    %87 = arith.truncf %86 : vector<16x16xf32> to vector<16x16xbf16>
    %cst_33 = arith.constant dense<0.000000e+00> : vector<16x16xf32>
    %88 = tpu.matmul %87, %72, %cst_33 {dimension_numbers = #tpu.dot_dimension_numbers<[1], [0], [0], [1], [0, 0, 1, 1], [], []>} : vector<16x16xbf16>, vector<16x16xbf16>, vector<16x16xf32> -> vector<16x16xf32>
    %c0_34 = arith.constant 0 : index
    %c16 = arith.constant 16 : index
    %89 = vector.load %arg7[%c0_34, %c16] : memref<16x32xf32, #tpu.memory_space<vmem>>, vector<16x16xf32>
    tpu.vector_store %arg7[%c0_34, %c16], %88 {strides = array<i32>} : memref<16x32xf32, #tpu.memory_space<vmem>>, vector<16x16xf32>,
    %c0_35 = arith.constant 0 : index
    %c0_36 = arith.constant 0 : index
    %90 = vector.load %arg7[%c0_35, %c0_36] : memref<16x32xf32, #tpu.memory_space<vmem>>, vector<16x32xf32>
    %91 = arith.truncf %90 : vector<16x32xf32> to vector<16x32xbf16>
    %cst_37 = arith.constant dense<0.000000e+00> : vector<16x32xf32>
    %92 = tpu.matmul %91, %29, %cst_37 {dimension_numbers = #tpu.dot_dimension_numbers<[1], [0], [0], [1], [0, 0, 1, 1], [], []>} : vector<16x32xbf16>, vector<32x32xbf16>, vector<16x32xf32> -> vector<16x32xf32>
    %93 = vector.broadcast %33 : vector<1x32xf32> to vector<16x32xf32>
    %94 = arith.addf %92, %93 : vector<16x32xf32>
    %95 = arith.addf %94, %25 : vector<16x32xf32>
    %cst_38 = arith.constant dense<0.000000e+00> : vector<16xf32>
    %96 = vector.multi_reduction <add>, %95, %cst_38 [1] : vector<16x32xf32> to vector<16xf32>
    %97 = vector.shape_cast %96 : vector<16xf32> to vector<16x1xf32>
    %cst_39 = arith.constant 3.200000e+01 : f32
    %98 = vector.broadcast %cst_39 : f32 to vector<16x1xf32>
    %99 = arith.divf %97, %98 : vector<16x1xf32>
    %100 = vector.broadcast %99 : vector<16x1xf32> to vector<16x32xf32>
    %101 = arith.subf %95, %100 : vector<16x32xf32>
    %102 = arith.mulf %101, %101 : vector<16x32xf32>
    %cst_40 = arith.constant dense<0.000000e+00> : vector<16xf32>
    %103 = vector.multi_reduction <add>, %102, %cst_40 [1] : vector<16x32xf32> to vector<16xf32>
    %104 = vector.shape_cast %103 : vector<16xf32> to vector<16x1xf32>
    %cst_41 = arith.constant 3.200000e+01 : f32
    %105 = vector.broadcast %cst_41 : f32 to vector<16x1xf32>
    %106 = arith.divf %104, %105 : vector<16x1xf32>
    %107 = vector.broadcast %99 : vector<16x1xf32> to vector<16x32xf32>
    %108 = arith.subf %95, %107 : vector<16x32xf32>
    %cst_42 = arith.constant 9.99999996E-13 : f32
    %109 = vector.broadcast %cst_42 : f32 to vector<16x1xf32>
    %110 = arith.addf %106, %109 : vector<16x1xf32>
    %111 = math.rsqrt %110 : vector<16x1xf32>
    %112 = vector.broadcast %111 : vector<16x1xf32> to vector<16x32xf32>
    %113 = arith.mulf %108, %112 : vector<16x32xf32>
    %114 = vector.broadcast %34 : vector<1x32xf32> to vector<16x32xf32>
    %115 = arith.mulf %113, %114 : vector<16x32xf32>
    %116 = vector.broadcast %35 : vector<1x32xf32> to vector<16x32xf32>
    %117 = arith.addf %115, %116 : vector<16x32xf32>
    %118 = arith.truncf %117 : vector<16x32xf32> to vector<16x32xbf16>
    %cst_43 = arith.constant dense<0.000000e+00> : vector<16x64xf32>
    %119 = tpu.matmul %118, %30, %cst_43 {dimension_numbers = #tpu.dot_dimension_numbers<[1], [0], [0], [1], [0, 0, 1, 1], [], []>} : vector<16x32xbf16>, vector<32x64xbf16>, vector<16x64xf32> -> vector<16x64xf32>
    %120 = vector.broadcast %36 : vector<1x64xf32> to vector<16x64xf32>
    %121 = arith.addf %119, %120 : vector<16x64xf32>
    %122 = arith.mulf %121, %121 : vector<16x64xf32>
    %123 = arith.mulf %121, %122 : vector<16x64xf32>
    %cst_44 = arith.constant 4.471500e-02 : f32
    %124 = vector.broadcast %cst_44 : f32 to vector<16x64xf32>
    %125 = arith.mulf %124, %123 : vector<16x64xf32>
    %126 = arith.addf %121, %125 : vector<16x64xf32>
    %cst_45 = arith.constant 0.797884583 : f32
    %127 = vector.broadcast %cst_45 : f32 to vector<16x64xf32>
    %128 = arith.mulf %127, %126 : vector<16x64xf32>
    %129 = math.tanh %128 : vector<16x64xf32>
    %cst_46 = arith.constant 1.000000e+00 : f32
    %130 = vector.broadcast %cst_46 : f32 to vector<16x64xf32>
    %131 = arith.addf %130, %129 : vector<16x64xf32>
    %cst_47 = arith.constant 5.000000e-01 : f32
    %132 = vector.broadcast %cst_47 : f32 to vector<16x64xf32>
    %133 = arith.mulf %132, %131 : vector<16x64xf32>
    %134 = arith.mulf %121, %133 : vector<16x64xf32>
    %135 = arith.truncf %134 : vector<16x64xf32> to vector<16x64xbf16>
    %cst_48 = arith.constant dense<0.000000e+00> : vector<16x32xf32>
    %136 = tpu.matmul %135, %31, %cst_48 {dimension_numbers = #tpu.dot_dimension_numbers<[1], [1], [0], [0], [0, 0, 1, 0], [], []>} : vector<16x64xbf16>, vector<32x64xbf16>, vector<16x32xf32> -> vector<16x32xf32>
    %137 = vector.broadcast %37 : vector<1x32xf32> to vector<16x32xf32>
    %138 = arith.addf %136, %137 : vector<16x32xf32>
    %139 = arith.addf %138, %117 : vector<16x32xf32>
    %cst_49 = arith.constant dense<0.000000e+00> : vector<16xf32>
    %140 = vector.multi_reduction <add>, %139, %cst_49 [1] : vector<16x32xf32> to vector<16xf32>
    %141 = vector.shape_cast %140 : vector<16xf32> to vector<16x1xf32>
    %cst_50 = arith.constant 3.200000e+01 : f32
    %142 = vector.broadcast %cst_50 : f32 to vector<16x1xf32>
    %143 = arith.divf %141, %142 : vector<16x1xf32>
    %144 = vector.broadcast %143 : vector<16x1xf32> to vector<16x32xf32>
    %145 = arith.subf %139, %144 : vector<16x32xf32>
    %146 = arith.mulf %145, %145 : vector<16x32xf32>
    %cst_51 = arith.constant dense<0.000000e+00> : vector<16xf32>
    %147 = vector.multi_reduction <add>, %146, %cst_51 [1] : vector<16x32xf32> to vector<16xf32>
    %148 = vector.shape_cast %147 : vector<16xf32> to vector<16x1xf32>
    %cst_52 = arith.constant 3.200000e+01 : f32
    %149 = vector.broadcast %cst_52 : f32 to vector<16x1xf32>
    %150 = arith.divf %148, %149 : vector<16x1xf32>
    %151 = vector.broadcast %143 : vector<16x1xf32> to vector<16x32xf32>
    %152 = arith.subf %139, %151 : vector<16x32xf32>
    %cst_53 = arith.constant 9.99999996E-13 : f32
    %153 = vector.broadcast %cst_53 : f32 to vector<16x1xf32>
    %154 = arith.addf %150, %153 : vector<16x1xf32>
    %155 = math.rsqrt %154 : vector<16x1xf32>
    %156 = vector.broadcast %155 : vector<16x1xf32> to vector<16x32xf32>
    %157 = arith.mulf %152, %156 : vector<16x32xf32>
    %158 = vector.broadcast %38 : vector<1x32xf32> to vector<16x32xf32>
    %159 = arith.mulf %157, %158 : vector<16x32xf32>
    %160 = vector.broadcast %39 : vector<1x32xf32> to vector<16x32xf32>
    %161 = arith.addf %159, %160 : vector<16x32xf32>
    %c1_54 = arith.constant 1 : index
    %c0_55 = arith.constant 0 : index
    %c0_56 = arith.constant 0 : index
    %162 = vector.load %arg4[%c1_54, %c0_55, %c0_56] : memref<2x32x256xbf16, #tpu.memory_space<vmem>>, vector<1x32x256xbf16>
    %163 = vector.shape_cast %162 : vector<1x32x256xbf16> to vector<32x256xbf16>
    %164 = vector.extract_strided_slice %163 {offsets = [0, 0], sizes = [32, 96], strides = [1, 1]} : vector<32x256xbf16> to vector<32x96xbf16>
    %165 = vector.extract_strided_slice %163 {offsets = [0, 96], sizes = [32, 32], strides = [1, 1]} : vector<32x256xbf16> to vector<32x32xbf16>
    %166 = vector.extract_strided_slice %163 {offsets = [0, 128], sizes = [32, 64], strides = [1, 1]} : vector<32x256xbf16> to vector<32x64xbf16>
    %167 = vector.extract_strided_slice %163 {offsets = [0, 192], sizes = [32, 64], strides = [1, 1]} : vector<32x256xbf16> to vector<32x64xbf16>
    %c12 = arith.constant 12 : index
    %c0_57 = arith.constant 0 : index
    %168 = vector.load %arg3[%c12, %c0_57] : memref<20x96xf32, #tpu.memory_space<vmem>>, vector<1x96xf32>
    %c13 = arith.constant 13 : index
    %c0_58 = arith.constant 0 : index
    %169 = vector.load %arg3[%c13, %c0_58] : memref<20x96xf32, #tpu.memory_space<vmem>>, vector<1x32xf32>
    %c14 = arith.constant 14 : index
    %c0_59 = arith.constant 0 : index
    %170 = vector.load %arg3[%c14, %c0_59] : memref<20x96xf32, #tpu.memory_space<vmem>>, vector<1x32xf32>
    %c15 = arith.constant 15 : index
    %c0_60 = arith.constant 0 : index
    %171 = vector.load %arg3[%c15, %c0_60] : memref<20x96xf32, #tpu.memory_space<vmem>>, vector<1x32xf32>
    %c16_61 = arith.constant 16 : index
    %c0_62 = arith.constant 0 : index
    %172 = vector.load %arg3[%c16_61, %c0_62] : memref<20x96xf32, #tpu.memory_space<vmem>>, vector<1x64xf32>
    %c17 = arith.constant 17 : index
    %c0_63 = arith.constant 0 : index
    %173 = vector.load %arg3[%c17, %c0_63] : memref<20x96xf32, #tpu.memory_space<vmem>>, vector<1x32xf32>
    %c18 = arith.constant 18 : index
    %c0_64 = arith.constant 0 : index
    %174 = vector.load %arg3[%c18, %c0_64] : memref<20x96xf32, #tpu.memory_space<vmem>>, vector<1x32xf32>
    %c19 = arith.constant 19 : index
    %c0_65 = arith.constant 0 : index
    %175 = vector.load %arg3[%c19, %c0_65] : memref<20x96xf32, #tpu.memory_space<vmem>>, vector<1x32xf32>
    %176 = arith.truncf %161 : vector<16x32xf32> to vector<16x32xbf16>
    %cst_66 = arith.constant dense<0.000000e+00> : vector<16x96xf32>
    %177 = tpu.matmul %176, %164, %cst_66 {dimension_numbers = #tpu.dot_dimension_numbers<[1], [0], [0], [1], [0, 0, 1, 1], [], []>} : vector<16x32xbf16>, vector<32x96xbf16>, vector<16x96xf32> -> vector<16x96xf32>
    %178 = vector.broadcast %168 : vector<1x96xf32> to vector<16x96xf32>
    %179 = arith.addf %177, %178 : vector<16x96xf32>
    %180 = vector.extract_strided_slice %179 {offsets = [0, 0], sizes = [16, 16], strides = [1, 1]} : vector<16x96xf32> to vector<16x16xf32>
    %181 = arith.truncf %180 : vector<16x16xf32> to vector<16x16xbf16>
    %182 = vector.extract_strided_slice %179 {offsets = [0, 32], sizes = [16, 16], strides = [1, 1]} : vector<16x96xf32> to vector<16x16xf32>
    %183 = arith.truncf %182 : vector<16x16xf32> to vector<16x16xbf16>
    %184 = vector.extract_strided_slice %179 {offsets = [0, 64], sizes = [16, 16], strides = [1, 1]} : vector<16x96xf32> to vector<16x16xf32>
    %185 = arith.truncf %184 : vector<16x16xf32> to vector<16x16xbf16>
    %cst_67 = arith.constant dense<0.000000e+00> : vector<16x16xf32>
    %186 = tpu.matmul %181, %183, %cst_67 {dimension_numbers = #tpu.dot_dimension_numbers<[1], [1], [0], [0], [0, 0, 1, 0], [], []>} : vector<16x16xbf16>, vector<16x16xbf16>, vector<16x16xf32> -> vector<16x16xf32>
    %cst_68 = arith.constant 2.500000e-01 : f32
    %187 = vector.broadcast %cst_68 : f32 to vector<16x16xf32>
    %188 = arith.mulf %186, %187 : vector<16x16xf32>
    %189 = arith.addf %188, %0 : vector<16x16xf32>
    %cst_69 = arith.constant dense<0xFF800000> : vector<16xf32>
    %190 = vector.multi_reduction <maximumf>, %189, %cst_69 [1] : vector<16x16xf32> to vector<16xf32>
    %191 = vector.shape_cast %190 : vector<16xf32> to vector<16x1xf32>
    %192 = vector.broadcast %191 : vector<16x1xf32> to vector<16x16xf32>
    %193 = arith.subf %189, %192 : vector<16x16xf32>
    %194 = math.exp %193 : vector<16x16xf32>
    %cst_70 = arith.constant dense<0.000000e+00> : vector<16xf32>
    %195 = vector.multi_reduction <add>, %194, %cst_70 [1] : vector<16x16xf32> to vector<16xf32>
    %196 = vector.shape_cast %195 : vector<16xf32> to vector<16x1xf32>
    %197 = tpu.reciprocal %196 {approx = true} : vector<16x1xf32> -> vector<16x1xf32>
    %198 = vector.broadcast %197 : vector<16x1xf32> to vector<16x16xf32>
    %199 = arith.mulf %194, %198 : vector<16x16xf32>
    %200 = arith.truncf %199 : vector<16x16xf32> to vector<16x16xbf16>
    %cst_71 = arith.constant dense<0.000000e+00> : vector<16x16xf32>
    %201 = tpu.matmul %200, %185, %cst_71 {dimension_numbers = #tpu.dot_dimension_numbers<[1], [0], [0], [1], [0, 0, 1, 1], [], []>} : vector<16x16xbf16>, vector<16x16xbf16>, vector<16x16xf32> -> vector<16x16xf32>
    %c0_72 = arith.constant 0 : index
    %c0_73 = arith.constant 0 : index
    %202 = vector.load %arg7[%c0_72, %c0_73] : memref<16x32xf32, #tpu.memory_space<vmem>>, vector<16x16xf32>
    tpu.vector_store %arg7[%c0_72, %c0_73], %201 {strides = array<i32>} : memref<16x32xf32, #tpu.memory_space<vmem>>, vector<16x16xf32>,
    %203 = vector.extract_strided_slice %179 {offsets = [0, 16], sizes = [16, 16], strides = [1, 1]} : vector<16x96xf32> to vector<16x16xf32>
    %204 = arith.truncf %203 : vector<16x16xf32> to vector<16x16xbf16>
    %205 = vector.extract_strided_slice %179 {offsets = [0, 48], sizes = [16, 16], strides = [1, 1]} : vector<16x96xf32> to vector<16x16xf32>
    %206 = arith.truncf %205 : vector<16x16xf32> to vector<16x16xbf16>
    %207 = vector.extract_strided_slice %179 {offsets = [0, 80], sizes = [16, 16], strides = [1, 1]} : vector<16x96xf32> to vector<16x16xf32>
    %208 = arith.truncf %207 : vector<16x16xf32> to vector<16x16xbf16>
    %cst_74 = arith.constant dense<0.000000e+00> : vector<16x16xf32>
    %209 = tpu.matmul %204, %206, %cst_74 {dimension_numbers = #tpu.dot_dimension_numbers<[1], [1], [0], [0], [0, 0, 1, 0], [], []>} : vector<16x16xbf16>, vector<16x16xbf16>, vector<16x16xf32> -> vector<16x16xf32>
    %cst_75 = arith.constant 2.500000e-01 : f32
    %210 = vector.broadcast %cst_75 : f32 to vector<16x16xf32>
    %211 = arith.mulf %209, %210 : vector<16x16xf32>
    %212 = arith.addf %211, %0 : vector<16x16xf32>
    %cst_76 = arith.constant dense<0xFF800000> : vector<16xf32>
    %213 = vector.multi_reduction <maximumf>, %212, %cst_76 [1] : vector<16x16xf32> to vector<16xf32>
    %214 = vector.shape_cast %213 : vector<16xf32> to vector<16x1xf32>
    %215 = vector.broadcast %214 : vector<16x1xf32> to vector<16x16xf32>
    %216 = arith.subf %212, %215 : vector<16x16xf32>
    %217 = math.exp %216 : vector<16x16xf32>
    %cst_77 = arith.constant dense<0.000000e+00> : vector<16xf32>
    %218 = vector.multi_reduction <add>, %217, %cst_77 [1] : vector<16x16xf32> to vector<16xf32>
    %219 = vector.shape_cast %218 : vector<16xf32> to vector<16x1xf32>
    %220 = tpu.reciprocal %219 {approx = true} : vector<16x1xf32> -> vector<16x1xf32>
    %221 = vector.broadcast %220 : vector<16x1xf32> to vector<16x16xf32>
    %222 = arith.mulf %217, %221 : vector<16x16xf32>
    %223 = arith.truncf %222 : vector<16x16xf32> to vector<16x16xbf16>
    %cst_78 = arith.constant dense<0.000000e+00> : vector<16x16xf32>
    %224 = tpu.matmul %223, %208, %cst_78 {dimension_numbers = #tpu.dot_dimension_numbers<[1], [0], [0], [1], [0, 0, 1, 1], [], []>} : vector<16x16xbf16>, vector<16x16xbf16>, vector<16x16xf32> -> vector<16x16xf32>
    %c0_79 = arith.constant 0 : index
    %c16_80 = arith.constant 16 : index
    %225 = vector.load %arg7[%c0_79, %c16_80] : memref<16x32xf32, #tpu.memory_space<vmem>>, vector<16x16xf32>
    tpu.vector_store %arg7[%c0_79, %c16_80], %224 {strides = array<i32>} : memref<16x32xf32, #tpu.memory_space<vmem>>, vector<16x16xf32>,
    %c0_81 = arith.constant 0 : index
    %c0_82 = arith.constant 0 : index
    %226 = vector.load %arg7[%c0_81, %c0_82] : memref<16x32xf32, #tpu.memory_space<vmem>>, vector<16x32xf32>
    %227 = arith.truncf %226 : vector<16x32xf32> to vector<16x32xbf16>
    %cst_83 = arith.constant dense<0.000000e+00> : vector<16x32xf32>
    %228 = tpu.matmul %227, %165, %cst_83 {dimension_numbers = #tpu.dot_dimension_numbers<[1], [0], [0], [1], [0, 0, 1, 1], [], []>} : vector<16x32xbf16>, vector<32x32xbf16>, vector<16x32xf32> -> vector<16x32xf32>
    %229 = vector.broadcast %169 : vector<1x32xf32> to vector<16x32xf32>
    %230 = arith.addf %228, %229 : vector<16x32xf32>
    %231 = arith.addf %230, %161 : vector<16x32xf32>
    %cst_84 = arith.constant dense<0.000000e+00> : vector<16xf32>
    %232 = vector.multi_reduction <add>, %231, %cst_84 [1] : vector<16x32xf32> to vector<16xf32>
    %233 = vector.shape_cast %232 : vector<16xf32> to vector<16x1xf32>
    %cst_85 = arith.constant 3.200000e+01 : f32
    %234 = vector.broadcast %cst_85 : f32 to vector<16x1xf32>
    %235 = arith.divf %233, %234 : vector<16x1xf32>
    %236 = vector.broadcast %235 : vector<16x1xf32> to vector<16x32xf32>
    %237 = arith.subf %231, %236 : vector<16x32xf32>
    %238 = arith.mulf %237, %237 : vector<16x32xf32>
    %cst_86 = arith.constant dense<0.000000e+00> : vector<16xf32>
    %239 = vector.multi_reduction <add>, %238, %cst_86 [1] : vector<16x32xf32> to vector<16xf32>
    %240 = vector.shape_cast %239 : vector<16xf32> to vector<16x1xf32>
    %cst_87 = arith.constant 3.200000e+01 : f32
    %241 = vector.broadcast %cst_87 : f32 to vector<16x1xf32>
    %242 = arith.divf %240, %241 : vector<16x1xf32>
    %243 = vector.broadcast %235 : vector<16x1xf32> to vector<16x32xf32>
    %244 = arith.subf %231, %243 : vector<16x32xf32>
    %cst_88 = arith.constant 9.99999996E-13 : f32
    %245 = vector.broadcast %cst_88 : f32 to vector<16x1xf32>
    %246 = arith.addf %242, %245 : vector<16x1xf32>
    %247 = math.rsqrt %246 : vector<16x1xf32>
    %248 = vector.broadcast %247 : vector<16x1xf32> to vector<16x32xf32>
    %249 = arith.mulf %244, %248 : vector<16x32xf32>
    %250 = vector.broadcast %170 : vector<1x32xf32> to vector<16x32xf32>
    %251 = arith.mulf %249, %250 : vector<16x32xf32>
    %252 = vector.broadcast %171 : vector<1x32xf32> to vector<16x32xf32>
    %253 = arith.addf %251, %252 : vector<16x32xf32>
    %254 = arith.truncf %253 : vector<16x32xf32> to vector<16x32xbf16>
    %cst_89 = arith.constant dense<0.000000e+00> : vector<16x64xf32>
    %255 = tpu.matmul %254, %166, %cst_89 {dimension_numbers = #tpu.dot_dimension_numbers<[1], [0], [0], [1], [0, 0, 1, 1], [], []>} : vector<16x32xbf16>, vector<32x64xbf16>, vector<16x64xf32> -> vector<16x64xf32>
    %256 = vector.broadcast %172 : vector<1x64xf32> to vector<16x64xf32>
    %257 = arith.addf %255, %256 : vector<16x64xf32>
    %258 = arith.mulf %257, %257 : vector<16x64xf32>
    %259 = arith.mulf %257, %258 : vector<16x64xf32>
    %cst_90 = arith.constant 4.471500e-02 : f32
    %260 = vector.broadcast %cst_90 : f32 to vector<16x64xf32>
    %261 = arith.mulf %260, %259 : vector<16x64xf32>
    %262 = arith.addf %257, %261 : vector<16x64xf32>
    %cst_91 = arith.constant 0.797884583 : f32
    %263 = vector.broadcast %cst_91 : f32 to vector<16x64xf32>
    %264 = arith.mulf %263, %262 : vector<16x64xf32>
    %265 = math.tanh %264 : vector<16x64xf32>
    %cst_92 = arith.constant 1.000000e+00 : f32
    %266 = vector.broadcast %cst_92 : f32 to vector<16x64xf32>
    %267 = arith.addf %266, %265 : vector<16x64xf32>
    %cst_93 = arith.constant 5.000000e-01 : f32
    %268 = vector.broadcast %cst_93 : f32 to vector<16x64xf32>
    %269 = arith.mulf %268, %267 : vector<16x64xf32>
    %270 = arith.mulf %257, %269 : vector<16x64xf32>
    %271 = arith.truncf %270 : vector<16x64xf32> to vector<16x64xbf16>
    %cst_94 = arith.constant dense<0.000000e+00> : vector<16x32xf32>
    %272 = tpu.matmul %271, %167, %cst_94 {dimension_numbers = #tpu.dot_dimension_numbers<[1], [1], [0], [0], [0, 0, 1, 0], [], []>} : vector<16x64xbf16>, vector<32x64xbf16>, vector<16x32xf32> -> vector<16x32xf32>
    %273 = vector.broadcast %173 : vector<1x32xf32> to vector<16x32xf32>
    %274 = arith.addf %272, %273 : vector<16x32xf32>
    %275 = arith.addf %274, %253 : vector<16x32xf32>
    %cst_95 = arith.constant dense<0.000000e+00> : vector<16xf32>
    %276 = vector.multi_reduction <add>, %275, %cst_95 [1] : vector<16x32xf32> to vector<16xf32>
    %277 = vector.shape_cast %276 : vector<16xf32> to vector<16x1xf32>
    %cst_96 = arith.constant 3.200000e+01 : f32
    %278 = vector.broadcast %cst_96 : f32 to vector<16x1xf32>
    %279 = arith.divf %277, %278 : vector<16x1xf32>
    %280 = vector.broadcast %279 : vector<16x1xf32> to vector<16x32xf32>
    %281 = arith.subf %275, %280 : vector<16x32xf32>
    %282 = arith.mulf %281, %281 : vector<16x32xf32>
    %cst_97 = arith.constant dense<0.000000e+00> : vector<16xf32>
    %283 = vector.multi_reduction <add>, %282, %cst_97 [1] : vector<16x32xf32> to vector<16xf32>
    %284 = vector.shape_cast %283 : vector<16xf32> to vector<16x1xf32>
    %cst_98 = arith.constant 3.200000e+01 : f32
    %285 = vector.broadcast %cst_98 : f32 to vector<16x1xf32>
    %286 = arith.divf %284, %285 : vector<16x1xf32>
    %287 = vector.broadcast %279 : vector<16x1xf32> to vector<16x32xf32>
    %288 = arith.subf %275, %287 : vector<16x32xf32>
    %cst_99 = arith.constant 9.99999996E-13 : f32
    %289 = vector.broadcast %cst_99 : f32 to vector<16x1xf32>
    %290 = arith.addf %286, %289 : vector<16x1xf32>
    %291 = math.rsqrt %290 : vector<16x1xf32>
    %292 = vector.broadcast %291 : vector<16x1xf32> to vector<16x32xf32>
    %293 = arith.mulf %288, %292 : vector<16x32xf32>
    %294 = vector.broadcast %174 : vector<1x32xf32> to vector<16x32xf32>
    %295 = arith.mulf %293, %294 : vector<16x32xf32>
    %296 = vector.broadcast %175 : vector<1x32xf32> to vector<16x32xf32>
    %297 = arith.addf %295, %296 : vector<16x32xf32>
    %298 = vector.extract_strided_slice %297 {offsets = [0, 0], sizes = [1, 32], strides = [1, 1]} : vector<16x32xf32> to vector<1x32xf32>
    %299 = vector.extract_strided_slice %297 {offsets = [8, 0], sizes = [1, 32], strides = [1, 1]} : vector<16x32xf32> to vector<1x32xf32>
    %300 = tpu.concatenate %298, %299 in 0 : vector<1x32xf32>, vector<1x32xf32> -> vector<2x32xf32>
    %301 = arith.truncf %300 : vector<2x32xf32> to vector<2x32xbf16>
    %c0_100 = arith.constant 0 : index
    %c0_101 = arith.constant 0 : index
    %302 = vector.load %arg5[%c0_100, %c0_101] : memref<32x36xbf16, #tpu.memory_space<vmem>>, vector<32x32xbf16>
    %cst_102 = arith.constant dense<0.000000e+00> : vector<2x32xf32>
    %303 = tpu.matmul %301, %302, %cst_102 {dimension_numbers = #tpu.dot_dimension_numbers<[1], [0], [0], [1], [0, 0, 1, 1], [], []>} : vector<2x32xbf16>, vector<32x32xbf16>, vector<2x32xf32> -> vector<2x32xf32>
    %c2 = arith.constant 2 : index
    %c0_103 = arith.constant 0 : index
    %304 = vector.load %arg3[%c2, %c0_103] : memref<20x96xf32, #tpu.memory_space<vmem>>, vector<1x32xf32>
    %305 = vector.broadcast %304 : vector<1x32xf32> to vector<2x32xf32>
    %306 = arith.addf %303, %305 : vector<2x32xf32>
    %307 = math.tanh %306 : vector<2x32xf32>
    %308 = arith.truncf %307 : vector<2x32xf32> to vector<2x32xbf16>
    %c0_104 = arith.constant 0 : index
    %c32 = arith.constant 32 : index
    %309 = vector.load %arg5[%c0_104, %c32] : memref<32x36xbf16, #tpu.memory_space<vmem>>, vector<32x4xbf16>
    %cst_105 = arith.constant dense<0.000000e+00> : vector<2x4xf32>
    %310 = tpu.matmul %308, %309, %cst_105 {dimension_numbers = #tpu.dot_dimension_numbers<[1], [0], [0], [1], [0, 0, 1, 1], [], []>} : vector<2x32xbf16>, vector<32x4xbf16>, vector<2x4xf32> -> vector<2x4xf32>
    %c3 = arith.constant 3 : index
    %c0_106 = arith.constant 0 : index
    %311 = vector.load %arg3[%c3, %c0_106] : memref<20x96xf32, #tpu.memory_space<vmem>>, vector<1x4xf32>
    %312 = vector.broadcast %311 : vector<1x4xf32> to vector<2x4xf32>
    %313 = arith.addf %310, %312 : vector<2x4xf32>
    %314 = arith.negf %313 : vector<2x4xf32>
    %315 = math.exp %314 : vector<2x4xf32>
    %cst_107 = arith.constant 1.000000e+00 : f32
    %316 = vector.broadcast %cst_107 : f32 to vector<2x4xf32>
    %317 = arith.addf %316, %315 : vector<2x4xf32>
    %318 = arith.divf %316, %317 : vector<2x4xf32>
    %c0_108 = arith.constant 0 : index
    %c0_109 = arith.constant 0 : index
    %319 = vector.load %arg6[%c0_108, %c0_109] : memref<2x4xf32, #tpu.memory_space<vmem>>, vector<2x4xf32>
    tpu.vector_store %arg6[%c0_108, %c0_109], %318 {strides = array<i32>} : memref<2x4xf32, #tpu.memory_space<vmem>>, vector<2x4xf32>,
    return
  }
  func.func @transform_0(%arg0: i32) -> (i32, i32) {
    %c0_i32 = arith.constant 0 : i32
    %c0_i32_0 = arith.constant 0 : i32
    %c0_i32_1 = arith.constant 0 : i32
    return %c0_i32, %c0_i32_0 : i32, i32
  }
  func.func @transform_1(%arg0: i32) -> (i32, i32) {
    %c0_i32 = arith.constant 0 : i32
    %c0_i32_0 = arith.constant 0 : i32
    %c0_i32_1 = arith.constant 0 : i32
    return %c0_i32, %c0_i32_0 : i32, i32
  }
  func.func @transform_2(%arg0: i32) -> (i32, i32) {
    %c0_i32 = arith.constant 0 : i32
    %c0_i32_0 = arith.constant 0 : i32
    %c0_i32_1 = arith.constant 0 : i32
    return %c0_i32, %c0_i32_0 : i32, i32
  }
  func.func @transform_3(%arg0: i32) -> (i32, i32, i32) {
    %c0_i32 = arith.constant 0 : i32
    %c0_i32_0 = arith.constant 0 : i32
    %c0_i32_1 = arith.constant 0 : i32
    %c0_i32_2 = arith.constant 0 : i32
    return %c0_i32, %c0_i32_0, %c0_i32_1 : i32, i32, i32
  }
  func.func @transform_4(%arg0: i32) -> (i32, i32) {
    %c0_i32 = arith.constant 0 : i32
    %c0_i32_0 = arith.constant 0 : i32
    %c0_i32_1 = arith.constant 0 : i32
    return %c0_i32, %c0_i32_0 : i32, i32
  }
  func.func @transform_5(%arg0: i32) -> (i32, i32) {
    %c0_i32 = arith.constant 0 : i32
    %c0_i32_0 = arith.constant 0 : i32
    %c0_i32_1 = arith.constant 0 : i32
    return %c0_i32, %c0_i32_0 : i32, i32
  }
}

</mosaic_0001>

<llo_original>
// kernel: custom_model_forward.1
$region0: #{custom_model_forward.1}
  #allocation0 [shape = 'u32[]', space=smem, size = 0x4, offset = 0x4, fixed_abs, tag = 'smem constant byte address 0x4 - core index']
  #allocation1 [shape = 'u32[144,128]{1,0:T(1,128)}', space=vmem, size = 0x12000, scoped, tag = 'internal scratch']
  #allocation2 [shape = 'f32[16,32]{1,0:T(8,128)}', space=vmem, size = 0x2000, scoped, tag = 'scratch operand']
  %s0 = inlined_call_operand.vmem [shape: f32[16,32], index: 0, kind: input, shape index: {}]
  %s1 = inlined_call_operand.vmem [shape: f32[16,16], index: 1, kind: input, shape index: {}]
  %s2 = inlined_call_operand.vmem [shape: f32[20,96], index: 2, kind: input, shape index: {}]
  %s3 = inlined_call_operand.vmem [shape: bf16[2,32,256], index: 3, kind: input, shape index: {}]
  %s4 = inlined_call_operand.vmem [shape: bf16[32,36], index: 4, kind: input, shape index: {}]
  %s5 = inlined_call_operand.hbm [shape: f32[2,4], index: 5, kind: output, shape index: {}]
  %s6 = sld [smem:[#allocation0]]
  $region30: #{custom_model_forward.1} parent=0
    _
  %s8 = ssub.s32 1, %s6
  %s9 = scalar_select 0, %s8, %s6
  $region1: #{custom_model_forward.1} parent=0
    #allocation3 [shape = 'u8[1024]{0}', space=vmem, size = 0x400, scoped, tag = 'output window, operand 0, single buffered']
    #allocation4 [shape = 's32[1]{0}', space=sflag, size = 0x4, scoped, tag = 'scoped memory for custom_model_forward.1']
    %10 = vsyncpa [#allocation4], 0
    // Predicated region
    $region2: #{custom_model_forward.1} parent=1 // pred_check
      _
    $region3: #{custom_model_forward.1} parent=1 // pred_check_branch
      %12 = sbr.rel (0) target = $region5
    $region4: #{custom_model_forward.1} parent=1 // pred_region
      _
    $region5: #{custom_model_forward.1} parent=1 // pred_fallthru
      _
    // Predicated region
    $region6: #{custom_model_forward.1} parent=1 // pred_check
      _
    $region7: #{custom_model_forward.1} parent=1 // pred_check_branch
      %14 = sbr.rel (0) target = $region9
    $region8: #{custom_model_forward.1} parent=1 // pred_region
      _
    $region9: #{custom_model_forward.1} parent=1 // pred_fallthru
      _
    // Predicated region
    $region10: #{custom_model_forward.1} parent=1 // pred_check
      _
    $region11: #{custom_model_forward.1} parent=1 // pred_check_branch
      %16 = sbr.rel (0) target = $region13
    $region12: #{custom_model_forward.1} parent=1 // pred_region
      _
    $region13: #{custom_model_forward.1} parent=1 // pred_fallthru
      _
    // Predicated region
    $region14: #{custom_model_forward.1} parent=1 // pred_check
      _
    $region15: #{custom_model_forward.1} parent=1 // pred_check_branch
      %18 = sbr.rel (0) target = $region17
    $region16: #{custom_model_forward.1} parent=1 // pred_region
      _
    $region17: #{custom_model_forward.1} parent=1 // pred_fallthru
      _
    // Predicated region
    $region18: #{custom_model_forward.1} parent=1 // pred_check
      _
    $region19: #{custom_model_forward.1} parent=1 // pred_check_branch
      %20 = sbr.rel (0) target = $region21
    $region20: #{custom_model_forward.1} parent=1 // pred_region
      _
    $region21: #{custom_model_forward.1} parent=1 // pred_fallthru
      _
    %v22 = vld [vmem:[%s1] sm:$0xff]
    %v23 = vld [vmem:[%s1 + $0x8] sm:$0xff]
    %v24 = vld [vmem:[%s0] sm:$0xff]
    %v25 = vld [vmem:[%s0 + $0x8] sm:$0xff]
    %v26 = vld [vmem:[%s2] sm:$0x1]
    %v27 = vld [vmem:[%s2 + $0x1] sm:$0x1]
    %vm28 = vcmask 261120
    %v29 = vsel %vm28, %v24, 0.0
    %30 = vadd.xlane.f32.xlu0 %v29
    %v31 = vpop.xlane.xlu0 %30
    %v32 = vsel %vm28, %v25, 0.0
    %33 = vadd.xlane.f32.xlu0 %v32
    %v34 = vpop.xlane.xlu0 %33
    %v35 = vrcp.pop 32.0
    %v36 = vmul.f32 %v31, %v35
    %v37 = vmul.f32 %v34, %v35
    %v38 = vsub.f32 %v24, %v36
    %v39 = vsub.f32 %v25, %v37
    %v40 = vmul.f32 %v38, %v38
    %v41 = vmul.f32 %v39, %v39
    %v42 = vsel %vm28, %v40, 0.0
    %43 = vadd.xlane.f32.xlu0 %v42
    %v44 = vpop.xlane.xlu0 %43
    %v45 = vsel %vm28, %v41, 0.0
    %46 = vadd.xlane.f32.xlu0 %v45
    %v47 = vpop.xlane.xlu0 %46
    %v48 = vmul.f32 %v44, %v35
    %v49 = vmul.f32 %v47, %v35
    %v50 = vadd.f32 %v48, 1e-12
    %v51 = vadd.f32 %v49, 1e-12
    %v52 = vrsqrt.pop %v50
    %v53 = vrsqrt.pop %v51
    %v54 = vmul.f32 %v38, %v52
    %v55 = vmul.f32 %v39, %v53
    %v56 = vlaneseq
    %v57 = vshrl.u32 %v56, 7
    %v58 = vsub.s32 0, %v57
    %v59 = vrot.slane %v26, %v58
    %v60 = vmul.f32 %v54, %v59
    %v61 = vmul.f32 %v55, %v59
    %v62 = vlaneseq
    %v63 = vshrl.u32 %v62, 7
    %v64 = vsub.s32 0, %v63
    %v65 = vrot.slane %v27, %v64
    %v66 = vadd.f32 %v60, %v65
    %v67 = vadd.f32 %v61, %v65
    %v68 = vld [vmem:[%s3] sm:$0xff]
    %v69 = vld [vmem:[%s3 + $0x8] sm:$0xff]
    %v70 = vld [vmem:[%s3 + $0x10] sm:$0xff]
    %v71 = vld [vmem:[%s3 + $0x18] sm:$0xff]
    %v72 = vld [vmem:[%s2 + $0x4] sm:$0x1]
    %v73 = vld [vmem:[%s2 + $0x5] sm:$0x1]
    %v74 = vld [vmem:[%s2 + $0x6] sm:$0x1]
    %v75 = vld [vmem:[%s2 + $0x7] sm:$0x1]
    %v76 = vld [vmem:[%s2 + $0x8] sm:$0x1]
    %v77 = vld [vmem:[%s2 + $0x9] sm:$0x1]
    %v78 = vld [vmem:[%s2 + $0xa] sm:$0x1]
    %v79 = vld [vmem:[%s2 + $0xb] sm:$0x1]
    %v80 = vpack.c.bf16 %v67, %v66
    %v81 = vlaneseq
    %v82 = vshrl.u32 %v81, 7
    %v83 = vsub.s32 0, %v82
    %v84 = vrot.slane %v72, %v83
    %v89 = vunpack.c.l.b16 %v68
    %v90 = vunpack.c.l.b16 %v69
    %v91 = vunpack.c.l.b16 %v70
    %v92 = vunpack.c.l.b16 %v71
    %v93 = vpack.c.b16 %v90, %v89
    %v94 = vpack.c.b16 %v92, %v91
    %v98 = vsel %vm28, %v80, 0
    %100 = vmatprep.subr.bf16.mxu0 0
    %101 = vmatpush1.bf16.msra.mxu0 %v93
    %102 = vmatprep.subr.bf16.mxu0 0
    %103 = vmatpush1.bf16.msra.mxu0 %v94
    %104 = vmatprep.subr.bf16.mxu0 0
    %105 = vmatpush1.bf16.msra.mxu0 0
    %106 = vmatprep.subr.bf16.mxu0 0
    %107 = vmatpush1.bf16.msra.mxu0 0
    %108 = vmatprep.subr.bf16.mxu0 0
    %109 = vmatpush1.bf16.msra.mxu0 0
    %110 = vmatprep.subr.bf16.mxu0 0
    %111 = vmatpush1.bf16.msra.mxu0 0
    %112 = vmatprep.subr.bf16.mxu0 0
    %113 = vmatpush1.bf16.msra.mxu0 0
    %114 = vmatprep.subr.bf16.mxu0 0
    %115 = vmatpush1.bf16.msra.mxu0 0
    %116 = vmatprep.subr.bf16.mxu0 0
    %117 = vmatpush1.bf16.msra.mxu0 0
    %118 = vmatprep.subr.bf16.mxu0 0
    %119 = vmatpush1.bf16.msra.mxu0 0
    %120 = vmatprep.subr.bf16.mxu0 0
    %121 = vmatpush1.bf16.msra.mxu0 0
    %122 = vmatprep.subr.bf16.mxu0 0
    %123 = vmatpush1.bf16.msra.mxu0 0
    %124 = vmatprep.subr.bf16.mxu0 0
    %125 = vmatpush1.bf16.msra.mxu0 0
    %126 = vmatprep.subr.bf16.mxu0 0
    %127 = vmatpush1.bf16.msra.mxu0 0
    %128 = vmatprep.subr.bf16.mxu0 0
    %129 = vmatpush1.bf16.msra.mxu0 0
    %130 = vmatprep.subr.bf16.mxu0 0
    %131 = vmatpush1.bf16.msra.mxu0 0
    %132 = vmatprep.mubr.bf16.mxu0 0
    %133 = vmatmul.mubr.bf16.gmra.mrb[0].mxu0 %v98
    %v134 = vpop.f32.mrb[0].mxu0
    %v135 = vadd.f32 %v84, %v134
    %v136 = vpop.f32.mrb[0].mxu0
    %v137 = vpop.f32.mrb[0].mxu0
    %v138 = vadd.f32 %v84, %v137
    %v139 = vpop.f32.mrb[0].mxu0
    %140 = vdwg.mxu0
    %v141 = vpack.c.bf16 %v138, %v135
    %143 = vrot.lane.b32.xlu0 %v141, 96
    %v144 = vpop.permute.xlu0 %143
    %vm145 = vcmask 130048
    %v147 = vsel %vm145, %v141, 0
    %v150 = vsel %vm145, %v144, 0
    %152 = vmatprep.subr.bf16.mxu0 0
    %153 = vmatpush1.bf16.xpose.msra.mxu0 %v150
    %154 = vmatprep.subr.bf16.mxu0 0
    %155 = vmatpush1.bf16.xpose.msra.mxu0 0
    %156 = vmatprep.subr.bf16.mxu0 0
    %157 = vmatpush1.bf16.xpose.msra.mxu0 0
    %158 = vmatprep.subr.bf16.mxu0 0
    %159 = vmatpush1.bf16.xpose.msra.mxu0 0
    %160 = vmatprep.subr.bf16.mxu0 0
    %161 = vmatpush1.bf16.xpose.msra.mxu0 0
    %162 = vmatprep.subr.bf16.mxu0 0
    %163 = vmatpush1.bf16.xpose.msra.mxu0 0
    %164 = vmatprep.subr.bf16.mxu0 0
    %165 = vmatpush1.bf16.xpose.msra.mxu0 0
    %166 = vmatprep.subr.bf16.mxu0 0
    %167 = vmatpush1.bf16.xpose.msra.mxu0 0
    %168 = vmatprep.subr.bf16.mxu0 0
    %169 = vmatpush1.bf16.xpose.msra.mxu0 0
    %170 = vmatprep.subr.bf16.mxu0 0
    %171 = vmatpush1.bf16.xpose.msra.mxu0 0
    %172 = vmatprep.subr.bf16.mxu0 0
    %173 = vmatpush1.bf16.xpose.msra.mxu0 0
    %174 = vmatprep.subr.bf16.mxu0 0
    %175 = vmatpush1.bf16.xpose.msra.mxu0 0
    %176 = vmatprep.subr.bf16.mxu0 0
    %177 = vmatpush1.bf16.xpose.msra.mxu0 0
    %178 = vmatprep.subr.bf16.mxu0 0
    %179 = vmatpush1.bf16.xpose.msra.mxu0 0
    %180 = vmatprep.subr.bf16.mxu0 0
    %181 = vmatpush1.bf16.xpose.msra.mxu0 0
    %182 = vmatprep.subr.bf16.mxu0 0
    %183 = vmatpush1.bf16.xpose.msra.mxu0 0
    %184 = vmatprep.mubr.bf16.mxu0 0
    %185 = vmatmul.mubr.bf16.gmra.mrb[0].mxu0 %v147
    %v186 = vpop.f32.mrb[0].mxu0
    %v187 = vadd.f32 0.0, %v186
    %v188 = vpop.f32.mrb[0].mxu0
    %v189 = vpop.f32.mrb[0].mxu0
    %v190 = vadd.f32 0.0, %v189
    %v191 = vpop.f32.mrb[0].mxu0
    %192 = vdwg.mxu0
    %v193 = vmul.f32 %v187, 0.25
    %v194 = vmul.f32 %v190, 0.25
    %v195 = vadd.f32 %v193, %v22
    %v196 = vadd.f32 %v194, %v23
    %v197 = vsel %vm145, %v195, -inf
    %198 = vmax.xlane.f32.xlu0 %v197
    %v199 = vpop.xlane.xlu0 %198
    %v200 = vsel %vm145, %v196, -inf
    %201 = vmax.xlane.f32.xlu0 %v200
    %v202 = vpop.xlane.xlu0 %201
    %v203 = vsub.f32 %v195, %v199
    %v204 = vsub.f32 %v196, %v202
    %v205 = vmul.f32 %v203, 1.442695
    %v206 = vpow.pop %v205
    %v207 = vmul.f32 %v204, 1.442695
    %v208 = vpow.pop %v207
    %v209 = vsel %vm145, %v206, 0.0
    %210 = vadd.xlane.f32.xlu0 %v209
    %v211 = vpop.xlane.xlu0 %210
    %v212 = vsel %vm145, %v208, 0.0
    %213 = vadd.xlane.f32.xlu0 %v212
    %v214 = vpop.xlane.xlu0 %213
    %v215 = vrcp.pop %v211
    %v216 = vrcp.pop %v214
    %v217 = vmul.f32 %v206, %v215
    %v218 = vmul.f32 %v208, %v216
    %v219 = vpack.c.bf16 %v218, %v217
    %220 = vrot.lane.b32.xlu0 %v141, 64
    %v221 = vpop.permute.xlu0 %220
    %v224 = vsel %vm145, %v219, 0
    %226 = vmatprep.subr.bf16.mxu0 0
    %227 = vmatpush1.bf16.msra.mxu0 %v221
    %228 = vmatprep.subr.bf16.mxu0 0
    %229 = vmatpush1.bf16.msra.mxu0 0
    %230 = vmatprep.subr.bf16.mxu0 0
    %231 = vmatpush1.bf16.msra.mxu0 0
    %232 = vmatprep.subr.bf16.mxu0 0
    %233 = vmatpush1.bf16.msra.mxu0 0
    %234 = vmatprep.subr.bf16.mxu0 0
    %235 = vmatpush1.bf16.msra.mxu0 0
    %236 = vmatprep.subr.bf16.mxu0 0
    %237 = vmatpush1.bf16.msra.mxu0 0
    %238 = vmatprep.subr.bf16.mxu0 0
    %239 = vmatpush1.bf16.msra.mxu0 0
    %240 = vmatprep.subr.bf16.mxu0 0
    %241 = vmatpush1.bf16.msra.mxu0 0
    %242 = vmatprep.subr.bf16.mxu0 0
    %243 = vmatpush1.bf16.msra.mxu0 0
    %244 = vmatprep.subr.bf16.mxu0 0
    %245 = vmatpush1.bf16.msra.mxu0 0
    %246 = vmatprep.subr.bf16.mxu0 0
    %247 = vmatpush1.bf16.msra.mxu0 0
    %248 = vmatprep.subr.bf16.mxu0 0
    %249 = vmatpush1.bf16.msra.mxu0 0
    %250 = vmatprep.subr.bf16.mxu0 0
    %251 = vmatpush1.bf16.msra.mxu0 0
    %252 = vmatprep.subr.bf16.mxu0 0
    %253 = vmatpush1.bf16.msra.mxu0 0
    %254 = vmatprep.subr.bf16.mxu0 0
    %255 = vmatpush1.bf16.msra.mxu0 0
    %256 = vmatprep.subr.bf16.mxu0 0
    %257 = vmatpush1.bf16.msra.mxu0 0
    %258 = vmatprep.mubr.bf16.mxu0 0
    %259 = vmatmul.mubr.bf16.gmra.mrb[0].mxu0 %v224
    %v260 = vpop.f32.mrb[0].mxu0
    %v261 = vadd.f32 0.0, %v260
    %v262 = vpop.f32.mrb[0].mxu0
    %v263 = vpop.f32.mrb[0].mxu0
    %v264 = vadd.f32 0.0, %v263
    %v265 = vpop.f32.mrb[0].mxu0
    %266 = vdwg.mxu0
    %267 = vst.msk [vmem:[#allocation2] sm:$0xff] %vm145, %v261
    %268 = vst.msk [vmem:[#allocation2 + $0x8] sm:$0xff] %vm145, %v264
    %269 = vrot.lane.b32.xlu0 %v141, 112
    %v270 = vpop.permute.xlu0 %269
    %271 = vrot.lane.b32.xlu0 %v141, 80
    %v272 = vpop.permute.xlu0 %271
    %v274 = vsel %vm145, %v270, 0
    %v277 = vsel %vm145, %v272, 0
    %279 = vmatprep.subr.bf16.mxu0 0
    %280 = vmatpush1.bf16.xpose.msra.mxu0 %v277
    %281 = vmatprep.subr.bf16.mxu0 0
    %282 = vmatpush1.bf16.xpose.msra.mxu0 0
    %283 = vmatprep.subr.bf16.mxu0 0
    %284 = vmatpush1.bf16.xpose.msra.mxu0 0
    %285 = vmatprep.subr.bf16.mxu0 0
    %286 = vmatpush1.bf16.xpose.msra.mxu0 0
    %287 = vmatprep.subr.bf16.mxu0 0
    %288 = vmatpush1.bf16.xpose.msra.mxu0 0
    %289 = vmatprep.subr.bf16.mxu0 0
    %290 = vmatpush1.bf16.xpose.msra.mxu0 0
    %291 = vmatprep.subr.bf16.mxu0 0
    %292 = vmatpush1.bf16.xpose.msra.mxu0 0
    %293 = vmatprep.subr.bf16.mxu0 0
    %294 = vmatpush1.bf16.xpose.msra.mxu0 0
    %295 = vmatprep.subr.bf16.mxu0 0
    %296 = vmatpush1.bf16.xpose.msra.mxu0 0
    %297 = vmatprep.subr.bf16.mxu0 0
    %298 = vmatpush1.bf16.xpose.msra.mxu0 0
    %299 = vmatprep.subr.bf16.mxu0 0
    %300 = vmatpush1.bf16.xpose.msra.mxu0 0
    %301 = vmatprep.subr.bf16.mxu0 0
    %302 = vmatpush1.bf16.xpose.msra.mxu0 0
    %303 = vmatprep.subr.bf16.mxu0 0
    %304 = vmatpush1.bf16.xpose.msra.mxu0 0
    %305 = vmatprep.subr.bf16.mxu0 0
    %306 = vmatpush1.bf16.xpose.msra.mxu0 0
    %307 = vmatprep.subr.bf16.mxu0 0
    %308 = vmatpush1.bf16.xpose.msra.mxu0 0
    %309 = vmatprep.subr.bf16.mxu0 0
    %310 = vmatpush1.bf16.xpose.msra.mxu0 0
    %311 = vmatprep.mubr.bf16.mxu0 0
    %312 = vmatmul.mubr.bf16.gmra.mrb[0].mxu0 %v274
    %v313 = vpop.f32.mrb[0].mxu0
    %v314 = vadd.f32 0.0, %v313
    %v315 = vpop.f32.mrb[0].mxu0
    %v316 = vpop.f32.mrb[0].mxu0
    %v317 = vadd.f32 0.0, %v316
    %v318 = vpop.f32.mrb[0].mxu0
    %319 = vdwg.mxu0
    %v320 = vmul.f32 %v314, 0.25
    %v321 = vmul.f32 %v317, 0.25
    %v322 = vadd.f32 %v320, %v22
    %v323 = vadd.f32 %v321, %v23
    %v324 = vsel %vm145, %v322, -inf
    %325 = vmax.xlane.f32.xlu0 %v324
    %v326 = vpop.xlane.xlu0 %325
    %v327 = vsel %vm145, %v323, -inf
    %328 = vmax.xlane.f32.xlu0 %v327
    %v329 = vpop.xlane.xlu0 %328
    %v330 = vsub.f32 %v322, %v326
    %v331 = vsub.f32 %v323, %v329
    %v332 = vmul.f32 %v330, 1.442695
    %v333 = vpow.pop %v332
    %v334 = vmul.f32 %v331, 1.442695
    %v335 = vpow.pop %v334
    %v336 = vsel %vm145, %v333, 0.0
    %337 = vadd.xlane.f32.xlu0 %v336
    %v338 = vpop.xlane.xlu0 %337
    %v339 = vsel %vm145, %v335, 0.0
    %340 = vadd.xlane.f32.xlu0 %v339
    %v341 = vpop.xlane.xlu0 %340
    %v342 = vrcp.pop %v338
    %v343 = vrcp.pop %v341
    %v344 = vmul.f32 %v333, %v342
    %v345 = vmul.f32 %v335, %v343
    %v346 = vpack.c.bf16 %v345, %v344
    %347 = vrot.lane.b32.xlu0 %v141, 48
    %v348 = vpop.permute.xlu0 %347
    %v351 = vsel %vm145, %v346, 0
    %353 = vmatprep.subr.bf16.mxu0 0
    %354 = vmatpush1.bf16.msra.mxu0 %v348
    %355 = vmatprep.subr.bf16.mxu0 0
    %356 = vmatpush1.bf16.msra.mxu0 0
    %357 = vmatprep.subr.bf16.mxu0 0
    %358 = vmatpush1.bf16.msra.mxu0 0
    %359 = vmatprep.subr.bf16.mxu0 0
    %360 = vmatpush1.bf16.msra.mxu0 0
    %361 = vmatprep.subr.bf16.mxu0 0
    %362 = vmatpush1.bf16.msra.mxu0 0
    %363 = vmatprep.subr.bf16.mxu0 0
    %364 = vmatpush1.bf16.msra.mxu0 0
    %365 = vmatprep.subr.bf16.mxu0 0
    %366 = vmatpush1.bf16.msra.mxu0 0
    %367 = vmatprep.subr.bf16.mxu0 0
    %368 = vmatpush1.bf16.msra.mxu0 0
    %369 = vmatprep.subr.bf16.mxu0 0
    %370 = vmatpush1.bf16.msra.mxu0 0
    %371 = vmatprep.subr.bf16.mxu0 0
    %372 = vmatpush1.bf16.msra.mxu0 0
    %373 = vmatprep.subr.bf16.mxu0 0
    %374 = vmatpush1.bf16.msra.mxu0 0
    %375 = vmatprep.subr.bf16.mxu0 0
    %376 = vmatpush1.bf16.msra.mxu0 0
    %377 = vmatprep.subr.bf16.mxu0 0
    %378 = vmatpush1.bf16.msra.mxu0 0
    %379 = vmatprep.subr.bf16.mxu0 0
    %380 = vmatpush1.bf16.msra.mxu0 0
    %381 = vmatprep.subr.bf16.mxu0 0
    %382 = vmatpush1.bf16.msra.mxu0 0
    %383 = vmatprep.subr.bf16.mxu0 0
    %384 = vmatpush1.bf16.msra.mxu0 0
    %385 = vmatprep.mubr.bf16.mxu0 0
    %386 = vmatmul.mubr.bf16.gmra.mrb[0].mxu0 %v351
    %v387 = vpop.f32.mrb[0].mxu0
    %v388 = vadd.f32 0.0, %v387
    %v389 = vpop.f32.mrb[0].mxu0
    %v390 = vpop.f32.mrb[0].mxu0
    %v391 = vadd.f32 0.0, %v390
    %v392 = vpop.f32.mrb[0].mxu0
    %393 = vdwg.mxu0
    %396 = vrot.lane.b32.xlu0 %v388, 16
    %v397 = vpop.permute.xlu0 %396
    %398 = vrot.lane.b32.xlu0 %v391, 16
    %v399 = vpop.permute.xlu0 %398
    %vm402 = vcmask 261248
    %403 = vst.msk [vmem:[#allocation2] sm:$0xff] %vm402, %v397
    %404 = vst.msk [vmem:[#allocation2 + $0x8] sm:$0xff] %vm402, %v399
    %v405 = vld [vmem:[#allocation2] sm:$0xff]
    %v406 = vld [vmem:[#allocation2 + $0x8] sm:$0xff]
    %v407 = vpack.c.bf16 %v406, %v405
    %v408 = vlaneseq
    %v409 = vshrl.u32 %v408, 7
    %v410 = vsub.s32 0, %v409
    %v411 = vrot.slane %v73, %v410
    %412 = vrot.lane.b32.xlu0 %v93, 32
    %v413 = vpop.permute.xlu0 %412
    %414 = vrot.lane.b32.xlu0 %v94, 32
    %v415 = vpop.permute.xlu0 %414
    %v419 = vsel %vm28, %v407, 0
    %421 = vmatprep.subr.bf16.mxu0 0
    %422 = vmatpush1.bf16.msra.mxu0 %v413
    %423 = vmatprep.subr.bf16.mxu0 0
    %424 = vmatpush1.bf16.msra.mxu0 %v415
    %425 = vmatprep.subr.bf16.mxu0 0
    %426 = vmatpush1.bf16.msra.mxu0 0
    %427 = vmatprep.subr.bf16.mxu0 0
    %428 = vmatpush1.bf16.msra.mxu0 0
    %429 = vmatprep.subr.bf16.mxu0 0
    %430 = vmatpush1.bf16.msra.mxu0 0
    %431 = vmatprep.subr.bf16.mxu0 0
    %432 = vmatpush1.bf16.msra.mxu0 0
    %433 = vmatprep.subr.bf16.mxu0 0
    %434 = vmatpush1.bf16.msra.mxu0 0
    %435 = vmatprep.subr.bf16.mxu0 0
    %436 = vmatpush1.bf16.msra.mxu0 0
    %437 = vmatprep.subr.bf16.mxu0 0
    %438 = vmatpush1.bf16.msra.mxu0 0
    %439 = vmatprep.subr.bf16.mxu0 0
    %440 = vmatpush1.bf16.msra.mxu0 0
    %441 = vmatprep.subr.bf16.mxu0 0
    %442 = vmatpush1.bf16.msra.mxu0 0
    %443 = vmatprep.subr.bf16.mxu0 0
    %444 = vmatpush1.bf16.msra.mxu0 0
    %445 = vmatprep.subr.bf16.mxu0 0
    %446 = vmatpush1.bf16.msra.mxu0 0
    %447 = vmatprep.subr.bf16.mxu0 0
    %448 = vmatpush1.bf16.msra.mxu0 0
    %449 = vmatprep.subr.bf16.mxu0 0
    %450 = vmatpush1.bf16.msra.mxu0 0
    %451 = vmatprep.subr.bf16.mxu0 0
    %452 = vmatpush1.bf16.msra.mxu0 0
    %453 = vmatprep.mubr.bf16.mxu0 0
    %454 = vmatmul.mubr.bf16.gmra.mrb[0].mxu0 %v419
    %v455 = vpop.f32.mrb[0].mxu0
    %v456 = vadd.f32 %v411, %v455
    %v457 = vpop.f32.mrb[0].mxu0
    %v458 = vpop.f32.mrb[0].mxu0
    %v459 = vadd.f32 %v411, %v458
    %v460 = vpop.f32.mrb[0].mxu0
    %461 = vdwg.mxu0
    %v462 = vadd.f32 %v456, %v66
    %v463 = vadd.f32 %v459, %v67
    %v464 = vsel %vm28, %v462, 0.0
    %465 = vadd.xlane.f32.xlu0 %v464
    %v466 = vpop.xlane.xlu0 %465
    %v467 = vsel %vm28, %v463, 0.0
    %468 = vadd.xlane.f32.xlu0 %v467
    %v469 = vpop.xlane.xlu0 %468
    %v470 = vmul.f32 %v466, %v35
    %v471 = vmul.f32 %v469, %v35
    %v472 = vsub.f32 %v462, %v470
    %v473 = vsub.f32 %v463, %v471
    %v474 = vmul.f32 %v472, %v472
    %v475 = vmul.f32 %v473, %v473
    %v476 = vsel %vm28, %v474, 0.0
    %477 = vadd.xlane.f32.xlu0 %v476
    %v478 = vpop.xlane.xlu0 %477
    %v479 = vsel %vm28, %v475, 0.0
    %480 = vadd.xlane.f32.xlu0 %v479
    %v481 = vpop.xlane.xlu0 %480
    %v482 = vmul.f32 %v478, %v35
    %v483 = vmul.f32 %v481, %v35
    %v484 = vadd.f32 %v482, 1e-12
    %v485 = vadd.f32 %v483, 1e-12
    %v486 = vrsqrt.pop %v484
    %v487 = vrsqrt.pop %v485
    %v488 = vmul.f32 %v472, %v486
    %v489 = vmul.f32 %v473, %v487
    %v490 = vlaneseq
    %v491 = vshrl.u32 %v490, 7
    %v492 = vsub.s32 0, %v491
    %v493 = vrot.slane %v74, %v492
    %v494 = vmul.f32 %v488, %v493
    %v495 = vmul.f32 %v489, %v493
    %v496 = vlaneseq
    %v497 = vshrl.u32 %v496, 7
    %v498 = vsub.s32 0, %v497
    %v499 = vrot.slane %v75, %v498
    %v500 = vadd.f32 %v494, %v499
    %v501 = vadd.f32 %v495, %v499
    %v502 = vpack.c.bf16 %v501, %v500
    %v503 = vlaneseq
    %v504 = vshrl.u32 %v503, 7
    %v505 = vsub.s32 0, %v504
    %v506 = vrot.slane %v76, %v505
    %v507 = vunpack.c.h.b16 %v68
    %v508 = vunpack.c.h.b16 %v69
    %v509 = vunpack.c.h.b16 %v70
    %v510 = vunpack.c.h.b16 %v71
    %v511 = vpack.c.b16 %v508, %v507
    %v512 = vpack.c.b16 %v510, %v509
    %v516 = vsel %vm28, %v502, 0
    %518 = vmatprep.subr.bf16.mxu0 0
    %519 = vmatpush1.bf16.msra.mxu0 %v511
    %520 = vmatprep.subr.bf16.mxu0 0
    %521 = vmatpush1.bf16.msra.mxu0 %v512
    %522 = vmatprep.subr.bf16.mxu0 0
    %523 = vmatpush1.bf16.msra.mxu0 0
    %524 = vmatprep.subr.bf16.mxu0 0
    %525 = vmatpush1.bf16.msra.mxu0 0
    %526 = vmatprep.subr.bf16.mxu0 0
    %527 = vmatpush1.bf16.msra.mxu0 0
    %528 = vmatprep.subr.bf16.mxu0 0
    %529 = vmatpush1.bf16.msra.mxu0 0
    %530 = vmatprep.subr.bf16.mxu0 0
    %531 = vmatpush1.bf16.msra.mxu0 0
    %532 = vmatprep.subr.bf16.mxu0 0
    %533 = vmatpush1.bf16.msra.mxu0 0
    %534 = vmatprep.subr.bf16.mxu0 0
    %535 = vmatpush1.bf16.msra.mxu0 0
    %536 = vmatprep.subr.bf16.mxu0 0
    %537 = vmatpush1.bf16.msra.mxu0 0
    %538 = vmatprep.subr.bf16.mxu0 0
    %539 = vmatpush1.bf16.msra.mxu0 0
    %540 = vmatprep.subr.bf16.mxu0 0
    %541 = vmatpush1.bf16.msra.mxu0 0
    %542 = vmatprep.subr.bf16.mxu0 0
    %543 = vmatpush1.bf16.msra.mxu0 0
    %544 = vmatprep.subr.bf16.mxu0 0
    %545 = vmatpush1.bf16.msra.mxu0 0
    %546 = vmatprep.subr.bf16.mxu0 0
    %547 = vmatpush1.bf16.msra.mxu0 0
    %548 = vmatprep.subr.bf16.mxu0 0
    %549 = vmatpush1.bf16.msra.mxu0 0
    %550 = vmatprep.mubr.bf16.mxu0 0
    %551 = vmatmul.mubr.bf16.gmra.mrb[0].mxu0 %v516
    %v552 = vpop.f32.mrb[0].mxu0
    %v553 = vadd.f32 %v506, %v552
    %v554 = vpop.f32.mrb[0].mxu0
    %v555 = vpop.f32.mrb[0].mxu0
    %v556 = vadd.f32 %v506, %v555
    %v557 = vpop.f32.mrb[0].mxu0
    %558 = vdwg.mxu0
    %v559 = vmul.f32 %v553, %v553
    %v560 = vmul.f32 %v556, %v556
    %v561 = vmul.f32 %v553, %v559
    %v562 = vmul.f32 %v556, %v560
    %v563 = vmul.f32 %v561, 0.044715
    %v564 = vmul.f32 %v562, 0.044715
    %v565 = vadd.f32 %v553, %v563
    %v566 = vadd.f32 %v556, %v564
    %v567 = vmul.f32 %v565, 0.7978846
    %v568 = vmul.f32 %v566, 0.7978846
    %v569 = vtanh.pop %v567
    %v570 = vtanh.pop %v568
    %v571 = vadd.f32 %v569, 1.0
    %v572 = vadd.f32 %v570, 1.0
    %v573 = vmul.f32 %v571, 0.5
    %v574 = vmul.f32 %v572, 0.5
    %v575 = vmul.f32 %v553, %v573
    %v576 = vmul.f32 %v556, %v574
    %v577 = vpack.c.bf16 %v576, %v575
    %v578 = vlaneseq
    %v579 = vshrl.u32 %v578, 7
    %v580 = vsub.s32 0, %v579
    %v581 = vrot.slane %v77, %v580
    %582 = vrot.lane.b32.xlu0 %v511, 64
    %v583 = vpop.permute.xlu0 %582
    %584 = vrot.lane.b32.xlu0 %v512, 64
    %v585 = vpop.permute.xlu0 %584
    %vm586 = vcmask 523264
    %v588 = vsel %vm586, %v577, 0
    %v591 = vsel %vm586, %v583, 0
    %v594 = vsel %vm586, %v585, 0
    %596 = vmatprep.subr.bf16.mxu0 0
    %597 = vmatpush1.bf16.xpose.msra.mxu0 %v591
    %598 = vmatprep.subr.bf16.mxu0 0
    %599 = vmatpush1.bf16.xpose.msra.mxu0 %v594
    %600 = vmatprep.subr.bf16.mxu0 0
    %601 = vmatpush1.bf16.xpose.msra.mxu0 0
    %602 = vmatprep.subr.bf16.mxu0 0
    %603 = vmatpush1.bf16.xpose.msra.mxu0 0
    %604 = vmatprep.subr.bf16.mxu0 0
    %605 = vmatpush1.bf16.xpose.msra.mxu0 0
    %606 = vmatprep.subr.bf16.mxu0 0
    %607 = vmatpush1.bf16.xpose.msra.mxu0 0
    %608 = vmatprep.subr.bf16.mxu0 0
    %609 = vmatpush1.bf16.xpose.msra.mxu0 0
    %610 = vmatprep.subr.bf16.mxu0 0
    %611 = vmatpush1.bf16.xpose.msra.mxu0 0
    %612 = vmatprep.subr.bf16.mxu0 0
    %613 = vmatpush1.bf16.xpose.msra.mxu0 0
    %614 = vmatprep.subr.bf16.mxu0 0
    %615 = vmatpush1.bf16.xpose.msra.mxu0 0
    %616 = vmatprep.subr.bf16.mxu0 0
    %617 = vmatpush1.bf16.xpose.msra.mxu0 0
    %618 = vmatprep.subr.bf16.mxu0 0
    %619 = vmatpush1.bf16.xpose.msra.mxu0 0
    %620 = vmatprep.subr.bf16.mxu0 0
    %621 = vmatpush1.bf16.xpose.msra.mxu0 0
    %622 = vmatprep.subr.bf16.mxu0 0
    %623 = vmatpush1.bf16.xpose.msra.mxu0 0
    %624 = vmatprep.subr.bf16.mxu0 0
    %625 = vmatpush1.bf16.xpose.msra.mxu0 0
    %626 = vmatprep.subr.bf16.mxu0 0
    %627 = vmatpush1.bf16.xpose.msra.mxu0 0
    %628 = vmatprep.mubr.bf16.mxu0 0
    %629 = vmatmul.mubr.bf16.gmra.mrb[0].mxu0 %v588
    %v630 = vpop.f32.mrb[0].mxu0
    %v631 = vadd.f32 %v581, %v630
    %v632 = vpop.f32.mrb[0].mxu0
    %v633 = vpop.f32.mrb[0].mxu0
    %v634 = vadd.f32 %v581, %v633
    %v635 = vpop.f32.mrb[0].mxu0
    %636 = vdwg.mxu0
    %v637 = vadd.f32 %v631, %v500
    %v638 = vadd.f32 %v634, %v501
    %v639 = vsel %vm28, %v637, 0.0
    %640 = vadd.xlane.f32.xlu0 %v639
    %v641 = vpop.xlane.xlu0 %640
    %v642 = vsel %vm28, %v638, 0.0
    %643 = vadd.xlane.f32.xlu0 %v642
    %v644 = vpop.xlane.xlu0 %643
    %v645 = vmul.f32 %v641, %v35
    %v646 = vmul.f32 %v644, %v35
    %v647 = vsub.f32 %v637, %v645
    %v648 = vsub.f32 %v638, %v646
    %v649 = vmul.f32 %v647, %v647
    %v650 = vmul.f32 %v648, %v648
    %v651 = vsel %vm28, %v649, 0.0
    %652 = vadd.xlane.f32.xlu0 %v651
    %v653 = vpop.xlane.xlu0 %652
    %v654 = vsel %vm28, %v650, 0.0
    %655 = vadd.xlane.f32.xlu0 %v654
    %v656 = vpop.xlane.xlu0 %655
    %v657 = vmul.f32 %v653, %v35
    %v658 = vmul.f32 %v656, %v35
    %v659 = vadd.f32 %v657, 1e-12
    %v660 = vadd.f32 %v658, 1e-12
    %v661 = vrsqrt.pop %v659
    %v662 = vrsqrt.pop %v660
    %v663 = vmul.f32 %v647, %v661
    %v664 = vmul.f32 %v648, %v662
    %v665 = vlaneseq
    %v666 = vshrl.u32 %v665, 7
    %v667 = vsub.s32 0, %v666
    %v668 = vrot.slane %v78, %v667
    %v669 = vmul.f32 %v663, %v668
    %v670 = vmul.f32 %v664, %v668
    %v671 = vlaneseq
    %v672 = vshrl.u32 %v671, 7
    %v673 = vsub.s32 0, %v672
    %v674 = vrot.slane %v79, %v673
    %v675 = vadd.f32 %v669, %v674
    %v676 = vadd.f32 %v670, %v674
    %s677 = scalar_lea.vmem %s3, 32
    %v678 = vld [vmem:[%s677] sm:$0xff]
    %v679 = vld [vmem:[%s677 + $0x8] sm:$0xff]
    %v680 = vld [vmem:[%s677 + $0x10] sm:$0xff]
    %v681 = vld [vmem:[%s677 + $0x18] sm:$0xff]
    %v682 = vld [vmem:[%s2 + $0xc] sm:$0x1]
    %v683 = vld [vmem:[%s2 + $0xd] sm:$0x1]
    %v684 = vld [vmem:[%s2 + $0xe] sm:$0x1]
    %v685 = vld [vmem:[%s2 + $0xf] sm:$0x1]
    %v686 = vld [vmem:[%s2 + $0x10] sm:$0x1]
    %v687 = vld [vmem:[%s2 + $0x11] sm:$0x1]
    %v688 = vld [vmem:[%s2 + $0x12] sm:$0x1]
    %v689 = vld [vmem:[%s2 + $0x13] sm:$0x1]
    %v690 = vpack.c.bf16 %v676, %v675
    %v691 = vlaneseq
    %v692 = vshrl.u32 %v691, 7
    %v693 = vsub.s32 0, %v692
    %v694 = vrot.slane %v682, %v693
    %v699 = vunpack.c.l.b16 %v678
    %v700 = vunpack.c.l.b16 %v679
    %v701 = vunpack.c.l.b16 %v680
    %v702 = vunpack.c.l.b16 %v681
    %v703 = vpack.c.b16 %v700, %v699
    %v704 = vpack.c.b16 %v702, %v701
    %v708 = vsel %vm28, %v690, 0
    %710 = vmatprep.subr.bf16.mxu0 0
    %711 = vmatpush1.bf16.msra.mxu0 %v703
    %712 = vmatprep.subr.bf16.mxu0 0
    %713 = vmatpush1.bf16.msra.mxu0 %v704
    %714 = vmatprep.subr.bf16.mxu0 0
    %715 = vmatpush1.bf16.msra.mxu0 0
    %716 = vmatprep.subr.bf16.mxu0 0
    %717 = vmatpush1.bf16.msra.mxu0 0
    %718 = vmatprep.subr.bf16.mxu0 0
    %719 = vmatpush1.bf16.msra.mxu0 0
    %720 = vmatprep.subr.bf16.mxu0 0
    %721 = vmatpush1.bf16.msra.mxu0 0
    %722 = vmatprep.subr.bf16.mxu0 0
    %723 = vmatpush1.bf16.msra.mxu0 0
    %724 = vmatprep.subr.bf16.mxu0 0
    %725 = vmatpush1.bf16.msra.mxu0 0
    %726 = vmatprep.subr.bf16.mxu0 0
    %727 = vmatpush1.bf16.msra.mxu0 0
    %728 = vmatprep.subr.bf16.mxu0 0
    %729 = vmatpush1.bf16.msra.mxu0 0
    %730 = vmatprep.subr.bf16.mxu0 0
    %731 = vmatpush1.bf16.msra.mxu0 0
    %732 = vmatprep.subr.bf16.mxu0 0
    %733 = vmatpush1.bf16.msra.mxu0 0
    %734 = vmatprep.subr.bf16.mxu0 0
    %735 = vmatpush1.bf16.msra.mxu0 0
    %736 = vmatprep.subr.bf16.mxu0 0
    %737 = vmatpush1.bf16.msra.mxu0 0
    %738 = vmatprep.subr.bf16.mxu0 0
    %739 = vmatpush1.bf16.msra.mxu0 0
    %740 = vmatprep.subr.bf16.mxu0 0
    %741 = vmatpush1.bf16.msra.mxu0 0
    %742 = vmatprep.mubr.bf16.mxu0 0
    %743 = vmatmul.mubr.bf16.gmra.mrb[0].mxu0 %v708
    %v744 = vpop.f32.mrb[0].mxu0
    %v745 = vadd.f32 %v694, %v744
    %v746 = vpop.f32.mrb[0].mxu0
    %v747 = vpop.f32.mrb[0].mxu0
    %v748 = vadd.f32 %v694, %v747
    %v749 = vpop.f32.mrb[0].mxu0
    %750 = vdwg.mxu0
    %v751 = vpack.c.bf16 %v748, %v745
    %753 = vrot.lane.b32.xlu0 %v751, 96
    %v754 = vpop.permute.xlu0 %753
    %v756 = vsel %vm145, %v751, 0
    %v759 = vsel %vm145, %v754, 0
    %761 = vmatprep.subr.bf16.mxu0 0
    %762 = vmatpush1.bf16.xpose.msra.mxu0 %v759
    %763 = vmatprep.subr.bf16.mxu0 0
    %764 = vmatpush1.bf16.xpose.msra.mxu0 0
    %765 = vmatprep.subr.bf16.mxu0 0
    %766 = vmatpush1.bf16.xpose.msra.mxu0 0
    %767 = vmatprep.subr.bf16.mxu0 0
    %768 = vmatpush1.bf16.xpose.msra.mxu0 0
    %769 = vmatprep.subr.bf16.mxu0 0
    %770 = vmatpush1.bf16.xpose.msra.mxu0 0
    %771 = vmatprep.subr.bf16.mxu0 0
    %772 = vmatpush1.bf16.xpose.msra.mxu0 0
    %773 = vmatprep.subr.bf16.mxu0 0
    %774 = vmatpush1.bf16.xpose.msra.mxu0 0
    %775 = vmatprep.subr.bf16.mxu0 0
    %776 = vmatpush1.bf16.xpose.msra.mxu0 0
    %777 = vmatprep.subr.bf16.mxu0 0
    %778 = vmatpush1.bf16.xpose.msra.mxu0 0
    %779 = vmatprep.subr.bf16.mxu0 0
    %780 = vmatpush1.bf16.xpose.msra.mxu0 0
    %781 = vmatprep.subr.bf16.mxu0 0
    %782 = vmatpush1.bf16.xpose.msra.mxu0 0
    %783 = vmatprep.subr.bf16.mxu0 0
    %784 = vmatpush1.bf16.xpose.msra.mxu0 0
    %785 = vmatprep.subr.bf16.mxu0 0
    %786 = vmatpush1.bf16.xpose.msra.mxu0 0
    %787 = vmatprep.subr.bf16.mxu0 0
    %788 = vmatpush1.bf16.xpose.msra.mxu0 0
    %789 = vmatprep.subr.bf16.mxu0 0
    %790 = vmatpush1.bf16.xpose.msra.mxu0 0
    %791 = vmatprep.subr.bf16.mxu0 0
    %792 = vmatpush1.bf16.xpose.msra.mxu0 0
    %793 = vmatprep.mubr.bf16.mxu0 0
    %794 = vmatmul.mubr.bf16.gmra.mrb[0].mxu0 %v756
    %v795 = vpop.f32.mrb[0].mxu0
    %v796 = vadd.f32 0.0, %v795
    %v797 = vpop.f32.mrb[0].mxu0
    %v798 = vpop.f32.mrb[0].mxu0
    %v799 = vadd.f32 0.0, %v798
    %v800 = vpop.f32.mrb[0].mxu0
    %801 = vdwg.mxu0
    %v802 = vmul.f32 %v796, 0.25
    %v803 = vmul.f32 %v799, 0.25
    %v804 = vadd.f32 %v802, %v22
    %v805 = vadd.f32 %v803, %v23
    %v806 = vsel %vm145, %v804, -inf
    %807 = vmax.xlane.f32.xlu0 %v806
    %v808 = vpop.xlane.xlu0 %807
    %v809 = vsel %vm145, %v805, -inf
    %810 = vmax.xlane.f32.xlu0 %v809
    %v811 = vpop.xlane.xlu0 %810
    %v812 = vsub.f32 %v804, %v808
    %v813 = vsub.f32 %v805, %v811
    %v814 = vmul.f32 %v812, 1.442695
    %v815 = vpow.pop %v814
    %v816 = vmul.f32 %v813, 1.442695
    %v817 = vpow.pop %v816
    %v818 = vsel %vm145, %v815, 0.0
    %819 = vadd.xlane.f32.xlu0 %v818
    %v820 = vpop.xlane.xlu0 %819
    %v821 = vsel %vm145, %v817, 0.0
    %822 = vadd.xlane.f32.xlu0 %v821
    %v823 = vpop.xlane.xlu0 %822
    %v824 = vrcp.pop %v820
    %v825 = vrcp.pop %v823
    %v826 = vmul.f32 %v815, %v824
    %v827 = vmul.f32 %v817, %v825
    %v828 = vpack.c.bf16 %v827, %v826
    %829 = vrot.lane.b32.xlu0 %v751, 64
    %v830 = vpop.permute.xlu0 %829
    %v833 = vsel %vm145, %v828, 0
    %835 = vmatprep.subr.bf16.mxu0 0
    %836 = vmatpush1.bf16.msra.mxu0 %v830
    %837 = vmatprep.subr.bf16.mxu0 0
    %838 = vmatpush1.bf16.msra.mxu0 0
    %839 = vmatprep.subr.bf16.mxu0 0
    %840 = vmatpush1.bf16.msra.mxu0 0
    %841 = vmatprep.subr.bf16.mxu0 0
    %842 = vmatpush1.bf16.msra.mxu0 0
    %843 = vmatprep.subr.bf16.mxu0 0
    %844 = vmatpush1.bf16.msra.mxu0 0
    %845 = vmatprep.subr.bf16.mxu0 0
    %846 = vmatpush1.bf16.msra.mxu0 0
    %847 = vmatprep.subr.bf16.mxu0 0
    %848 = vmatpush1.bf16.msra.mxu0 0
    %849 = vmatprep.subr.bf16.mxu0 0
    %850 = vmatpush1.bf16.msra.mxu0 0
    %851 = vmatprep.subr.bf16.mxu0 0
    %852 = vmatpush1.bf16.msra.mxu0 0
    %853 = vmatprep.subr.bf16.mxu0 0
    %854 = vmatpush1.bf16.msra.mxu0 0
    %855 = vmatprep.subr.bf16.mxu0 0
    %856 = vmatpush1.bf16.msra.mxu0 0
    %857 = vmatprep.subr.bf16.mxu0 0
    %858 = vmatpush1.bf16.msra.mxu0 0
    %859 = vmatprep.subr.bf16.mxu0 0
    %860 = vmatpush1.bf16.msra.mxu0 0
    %861 = vmatprep.subr.bf16.mxu0 0
    %862 = vmatpush1.bf16.msra.mxu0 0
    %863 = vmatprep.subr.bf16.mxu0 0
    %864 = vmatpush1.bf16.msra.mxu0 0
    %865 = vmatprep.subr.bf16.mxu0 0
    %866 = vmatpush1.bf16.msra.mxu0 0
    %867 = vmatprep.mubr.bf16.mxu0 0
    %868 = vmatmul.mubr.bf16.gmra.mrb[0].mxu0 %v833
    %v869 = vpop.f32.mrb[0].mxu0
    %v870 = vadd.f32 0.0, %v869
    %v871 = vpop.f32.mrb[0].mxu0
    %v872 = vpop.f32.mrb[0].mxu0
    %v873 = vadd.f32 0.0, %v872
    %v874 = vpop.f32.mrb[0].mxu0
    %875 = vdwg.mxu0
    %876 = vst.msk [vmem:[#allocation2] sm:$0xff] %vm145, %v870
    %877 = vst.msk [vmem:[#allocation2 + $0x8] sm:$0xff] %vm145, %v873
    %878 = vrot.lane.b32.xlu0 %v751, 112
    %v879 = vpop.permute.xlu0 %878
    %880 = vrot.lane.b32.xlu0 %v751, 80
    %v881 = vpop.permute.xlu0 %880
    %v883 = vsel %vm145, %v879, 0
    %v886 = vsel %vm145, %v881, 0
    %888 = vmatprep.subr.bf16.mxu0 0
    %889 = vmatpush1.bf16.xpose.msra.mxu0 %v886
    %890 = vmatprep.subr.bf16.mxu0 0
    %891 = vmatpush1.bf16.xpose.msra.mxu0 0
    %892 = vmatprep.subr.bf16.mxu0 0
    %893 = vmatpush1.bf16.xpose.msra.mxu0 0
    %894 = vmatprep.subr.bf16.mxu0 0
    %895 = vmatpush1.bf16.xpose.msra.mxu0 0
    %896 = vmatprep.subr.bf16.mxu0 0
    %897 = vmatpush1.bf16.xpose.msra.mxu0 0
    %898 = vmatprep.subr.bf16.mxu0 0
    %899 = vmatpush1.bf16.xpose.msra.mxu0 0
    %900 = vmatprep.subr.bf16.mxu0 0
    %901 = vmatpush1.bf16.xpose.msra.mxu0 0
    %902 = vmatprep.subr.bf16.mxu0 0
    %903 = vmatpush1.bf16.xpose.msra.mxu0 0
    %904 = vmatprep.subr.bf16.mxu0 0
    %905 = vmatpush1.bf16.xpose.msra.mxu0 0
    %906 = vmatprep.subr.bf16.mxu0 0
    %907 = vmatpush1.bf16.xpose.msra.mxu0 0
    %908 = vmatprep.subr.bf16.mxu0 0
    %909 = vmatpush1.bf16.xpose.msra.mxu0 0
    %910 = vmatprep.subr.bf16.mxu0 0
    %911 = vmatpush1.bf16.xpose.msra.mxu0 0
    %912 = vmatprep.subr.bf16.mxu0 0
    %913 = vmatpush1.bf16.xpose.msra.mxu0 0
    %914 = vmatprep.subr.bf16.mxu0 0
    %915 = vmatpush1.bf16.xpose.msra.mxu0 0
    %916 = vmatprep.subr.bf16.mxu0 0
    %917 = vmatpush1.bf16.xpose.msra.mxu0 0
    %918 = vmatprep.subr.bf16.mxu0 0
    %919 = vmatpush1.bf16.xpose.msra.mxu0 0
    %920 = vmatprep.mubr.bf16.mxu0 0
    %921 = vmatmul.mubr.bf16.gmra.mrb[0].mxu0 %v883
    %v922 = vpop.f32.mrb[0].mxu0
    %v923 = vadd.f32 0.0, %v922
    %v924 = vpop.f32.mrb[0].mxu0
    %v925 = vpop.f32.mrb[0].mxu0
    %v926 = vadd.f32 0.0, %v925
    %v927 = vpop.f32.mrb[0].mxu0
    %928 = vdwg.mxu0
    %v929 = vmul.f32 %v923, 0.25
    %v930 = vmul.f32 %v926, 0.25
    %v931 = vadd.f32 %v929, %v22
    %v932 = vadd.f32 %v930, %v23
    %v933 = vsel %vm145, %v931, -inf
    %934 = vmax.xlane.f32.xlu0 %v933
    %v935 = vpop.xlane.xlu0 %934
    %v936 = vsel %vm145, %v932, -inf
    %937 = vmax.xlane.f32.xlu0 %v936
    %v938 = vpop.xlane.xlu0 %937
    %v939 = vsub.f32 %v931, %v935
    %v940 = vsub.f32 %v932, %v938
    %v941 = vmul.f32 %v939, 1.442695
    %v942 = vpow.pop %v941
    %v943 = vmul.f32 %v940, 1.442695
    %v944 = vpow.pop %v943
    %v945 = vsel %vm145, %v942, 0.0
    %946 = vadd.xlane.f32.xlu0 %v945
    %v947 = vpop.xlane.xlu0 %946
    %v948 = vsel %vm145, %v944, 0.0
    %949 = vadd.xlane.f32.xlu0 %v948
    %v950 = vpop.xlane.xlu0 %949
    %v951 = vrcp.pop %v947
    %v952 = vrcp.pop %v950
    %v953 = vmul.f32 %v942, %v951
    %v954 = vmul.f32 %v944, %v952
    %v955 = vpack.c.bf16 %v954, %v953
    %956 = vrot.lane.b32.xlu0 %v751, 48
    %v957 = vpop.permute.xlu0 %956
    %v960 = vsel %vm145, %v955, 0
    %962 = vmatprep.subr.bf16.mxu0 0
    %963 = vmatpush1.bf16.msra.mxu0 %v957
    %964 = vmatprep.subr.bf16.mxu0 0
    %965 = vmatpush1.bf16.msra.mxu0 0
    %966 = vmatprep.subr.bf16.mxu0 0
    %967 = vmatpush1.bf16.msra.mxu0 0
    %968 = vmatprep.subr.bf16.mxu0 0
    %969 = vmatpush1.bf16.msra.mxu0 0
    %970 = vmatprep.subr.bf16.mxu0 0
    %971 = vmatpush1.bf16.msra.mxu0 0
    %972 = vmatprep.subr.bf16.mxu0 0
    %973 = vmatpush1.bf16.msra.mxu0 0
    %974 = vmatprep.subr.bf16.mxu0 0
    %975 = vmatpush1.bf16.msra.mxu0 0
    %976 = vmatprep.subr.bf16.mxu0 0
    %977 = vmatpush1.bf16.msra.mxu0 0
    %978 = vmatprep.subr.bf16.mxu0 0
    %979 = vmatpush1.bf16.msra.mxu0 0
    %980 = vmatprep.subr.bf16.mxu0 0
    %981 = vmatpush1.bf16.msra.mxu0 0
    %982 = vmatprep.subr.bf16.mxu0 0
    %983 = vmatpush1.bf16.msra.mxu0 0
    %984 = vmatprep.subr.bf16.mxu0 0
    %985 = vmatpush1.bf16.msra.mxu0 0
    %986 = vmatprep.subr.bf16.mxu0 0
    %987 = vmatpush1.bf16.msra.mxu0 0
    %988 = vmatprep.subr.bf16.mxu0 0
    %989 = vmatpush1.bf16.msra.mxu0 0
    %990 = vmatprep.subr.bf16.mxu0 0
    %991 = vmatpush1.bf16.msra.mxu0 0
    %992 = vmatprep.subr.bf16.mxu0 0
    %993 = vmatpush1.bf16.msra.mxu0 0
    %994 = vmatprep.mubr.bf16.mxu0 0
    %995 = vmatmul.mubr.bf16.gmra.mrb[0].mxu0 %v960
    %v996 = vpop.f32.mrb[0].mxu0
    %v997 = vadd.f32 0.0, %v996
    %v998 = vpop.f32.mrb[0].mxu0
    %v999 = vpop.f32.mrb[0].mxu0
    %v1000 = vadd.f32 0.0, %v999
    %v1001 = vpop.f32.mrb[0].mxu0
    %1002 = vdwg.mxu0
    %1005 = vrot.lane.b32.xlu0 %v997, 16
    %v1006 = vpop.permute.xlu0 %1005
    %1007 = vrot.lane.b32.xlu0 %v1000, 16
    %v1008 = vpop.permute.xlu0 %1007
    %1011 = vst.msk [vmem:[#allocation2] sm:$0xff] %vm402, %v1006
    %1012 = vst.msk [vmem:[#allocation2 + $0x8] sm:$0xff] %vm402, %v1008
    %v1013 = vld [vmem:[#allocation2] sm:$0xff]
    %v1014 = vld [vmem:[#allocation2 + $0x8] sm:$0xff]
    %v1015 = vpack.c.bf16 %v1014, %v1013
    %v1016 = vlaneseq
    %v1017 = vshrl.u32 %v1016, 7
    %v1018 = vsub.s32 0, %v1017
    %v1019 = vrot.slane %v683, %v1018
    %1020 = vrot.lane.b32.xlu0 %v703, 32
    %v1021 = vpop.permute.xlu0 %1020
    %1022 = vrot.lane.b32.xlu0 %v704, 32
    %v1023 = vpop.permute.xlu0 %1022
    %v1027 = vsel %vm28, %v1015, 0
    %1029 = vmatprep.subr.bf16.mxu0 0
    %1030 = vmatpush1.bf16.msra.mxu0 %v1021
    %1031 = vmatprep.subr.bf16.mxu0 0
    %1032 = vmatpush1.bf16.msra.mxu0 %v1023
    %1033 = vmatprep.subr.bf16.mxu0 0
    %1034 = vmatpush1.bf16.msra.mxu0 0
    %1035 = vmatprep.subr.bf16.mxu0 0
    %1036 = vmatpush1.bf16.msra.mxu0 0
    %1037 = vmatprep.subr.bf16.mxu0 0
    %1038 = vmatpush1.bf16.msra.mxu0 0
    %1039 = vmatprep.subr.bf16.mxu0 0
    %1040 = vmatpush1.bf16.msra.mxu0 0
    %1041 = vmatprep.subr.bf16.mxu0 0
    %1042 = vmatpush1.bf16.msra.mxu0 0
    %1043 = vmatprep.subr.bf16.mxu0 0
    %1044 = vmatpush1.bf16.msra.mxu0 0
    %1045 = vmatprep.subr.bf16.mxu0 0
    %1046 = vmatpush1.bf16.msra.mxu0 0
    %1047 = vmatprep.subr.bf16.mxu0 0
    %1048 = vmatpush1.bf16.msra.mxu0 0
    %1049 = vmatprep.subr.bf16.mxu0 0
    %1050 = vmatpush1.bf16.msra.mxu0 0
    %1051 = vmatprep.subr.bf16.mxu0 0
    %1052 = vmatpush1.bf16.msra.mxu0 0
    %1053 = vmatprep.subr.bf16.mxu0 0
    %1054 = vmatpush1.bf16.msra.mxu0 0
    %1055 = vmatprep.subr.bf16.mxu0 0
    %1056 = vmatpush1.bf16.msra.mxu0 0
    %1057 = vmatprep.subr.bf16.mxu0 0
    %1058 = vmatpush1.bf16.msra.mxu0 0
    %1059 = vmatprep.subr.bf16.mxu0 0
    %1060 = vmatpush1.bf16.msra.mxu0 0
    %1061 = vmatprep.mubr.bf16.mxu0 0
    %1062 = vmatmul.mubr.bf16.gmra.mrb[0].mxu0 %v1027
    %v1063 = vpop.f32.mrb[0].mxu0
    %v1064 = vadd.f32 %v1019, %v1063
    %v1065 = vpop.f32.mrb[0].mxu0
    %v1066 = vpop.f32.mrb[0].mxu0
    %v1067 = vadd.f32 %v1019, %v1066
    %v1068 = vpop.f32.mrb[0].mxu0
    %1069 = vdwg.mxu0
    %v1070 = vadd.f32 %v1064, %v675
    %v1071 = vadd.f32 %v1067, %v676
    %v1072 = vsel %vm28, %v1070, 0.0
    %1073 = vadd.xlane.f32.xlu0 %v1072
    %v1074 = vpop.xlane.xlu0 %1073
    %v1075 = vsel %vm28, %v1071, 0.0
    %1076 = vadd.xlane.f32.xlu0 %v1075
    %v1077 = vpop.xlane.xlu0 %1076
    %v1078 = vmul.f32 %v1074, %v35
    %v1079 = vmul.f32 %v1077, %v35
    %v1080 = vsub.f32 %v1070, %v1078
    %v1081 = vsub.f32 %v1071, %v1079
    %v1082 = vmul.f32 %v1080, %v1080
    %v1083 = vmul.f32 %v1081, %v1081
    %v1084 = vsel %vm28, %v1082, 0.0
    %1085 = vadd.xlane.f32.xlu0 %v1084
    %v1086 = vpop.xlane.xlu0 %1085
    %v1087 = vsel %vm28, %v1083, 0.0
    %1088 = vadd.xlane.f32.xlu0 %v1087
    %v1089 = vpop.xlane.xlu0 %1088
    %v1090 = vmul.f32 %v1086, %v35
    %v1091 = vmul.f32 %v1089, %v35
    %v1092 = vadd.f32 %v1090, 1e-12
    %v1093 = vadd.f32 %v1091, 1e-12
    %v1094 = vrsqrt.pop %v1092
    %v1095 = vrsqrt.pop %v1093
    %v1096 = vmul.f32 %v1080, %v1094
    %v1097 = vmul.f32 %v1081, %v1095
    %v1098 = vlaneseq
    %v1099 = vshrl.u32 %v1098, 7
    %v1100 = vsub.s32 0, %v1099
    %v1101 = vrot.slane %v684, %v1100
    %v1102 = vmul.f32 %v1096, %v1101
    %v1103 = vmul.f32 %v1097, %v1101
    %v1104 = vlaneseq
    %v1105 = vshrl.u32 %v1104, 7
    %v1106 = vsub.s32 0, %v1105
    %v1107 = vrot.slane %v685, %v1106
    %v1108 = vadd.f32 %v1102, %v1107
    %v1109 = vadd.f32 %v1103, %v1107
    %v1110 = vpack.c.bf16 %v1109, %v1108
    %v1111 = vlaneseq
    %v1112 = vshrl.u32 %v1111, 7
    %v1113 = vsub.s32 0, %v1112
    %v1114 = vrot.slane %v686, %v1113
    %v1115 = vunpack.c.h.b16 %v678
    %v1116 = vunpack.c.h.b16 %v679
    %v1117 = vunpack.c.h.b16 %v680
    %v1118 = vunpack.c.h.b16 %v681
    %v1119 = vpack.c.b16 %v1116, %v1115
    %v1120 = vpack.c.b16 %v1118, %v1117
    %v1124 = vsel %vm28, %v1110, 0
    %1126 = vmatprep.subr.bf16.mxu0 0
    %1127 = vmatpush1.bf16.msra.mxu0 %v1119
    %1128 = vmatprep.subr.bf16.mxu0 0
    %1129 = vmatpush1.bf16.msra.mxu0 %v1120
    %1130 = vmatprep.subr.bf16.mxu0 0
    %1131 = vmatpush1.bf16.msra.mxu0 0
    %1132 = vmatprep.subr.bf16.mxu0 0
    %1133 = vmatpush1.bf16.msra.mxu0 0
    %1134 = vmatprep.subr.bf16.mxu0 0
    %1135 = vmatpush1.bf16.msra.mxu0 0
    %1136 = vmatprep.subr.bf16.mxu0 0
    %1137 = vmatpush1.bf16.msra.mxu0 0
    %1138 = vmatprep.subr.bf16.mxu0 0
    %1139 = vmatpush1.bf16.msra.mxu0 0
    %1140 = vmatprep.subr.bf16.mxu0 0
    %1141 = vmatpush1.bf16.msra.mxu0 0
    %1142 = vmatprep.subr.bf16.mxu0 0
    %1143 = vmatpush1.bf16.msra.mxu0 0
    %1144 = vmatprep.subr.bf16.mxu0 0
    %1145 = vmatpush1.bf16.msra.mxu0 0
    %1146 = vmatprep.subr.bf16.mxu0 0
    %1147 = vmatpush1.bf16.msra.mxu0 0
    %1148 = vmatprep.subr.bf16.mxu0 0
    %1149 = vmatpush1.bf16.msra.mxu0 0
    %1150 = vmatprep.subr.bf16.mxu0 0
    %1151 = vmatpush1.bf16.msra.mxu0 0
    %1152 = vmatprep.subr.bf16.mxu0 0
    %1153 = vmatpush1.bf16.msra.mxu0 0
    %1154 = vmatprep.subr.bf16.mxu0 0
    %1155 = vmatpush1.bf16.msra.mxu0 0
    %1156 = vmatprep.subr.bf16.mxu0 0
    %1157 = vmatpush1.bf16.msra.mxu0 0
    %1158 = vmatprep.mubr.bf16.mxu0 0
    %1159 = vmatmul.mubr.bf16.gmra.mrb[0].mxu0 %v1124
    %v1160 = vpop.f32.mrb[0].mxu0
    %v1161 = vadd.f32 %v1114, %v1160
    %v1162 = vpop.f32.mrb[0].mxu0
    %v1163 = vpop.f32.mrb[0].mxu0
    %v1164 = vadd.f32 %v1114, %v1163
    %v1165 = vpop.f32.mrb[0].mxu0
    %1166 = vdwg.mxu0
    %v1167 = vmul.f32 %v1161, %v1161
    %v1168 = vmul.f32 %v1164, %v1164
    %v1169 = vmul.f32 %v1161, %v1167
    %v1170 = vmul.f32 %v1164, %v1168
    %v1171 = vmul.f32 %v1169, 0.044715
    %v1172 = vmul.f32 %v1170, 0.044715
    %v1173 = vadd.f32 %v1161, %v1171
    %v1174 = vadd.f32 %v1164, %v1172
    %v1175 = vmul.f32 %v1173, 0.7978846
    %v1176 = vmul.f32 %v1174, 0.7978846
    %v1177 = vtanh.pop %v1175
    %v1178 = vtanh.pop %v1176
    %v1179 = vadd.f32 %v1177, 1.0
    %v1180 = vadd.f32 %v1178, 1.0
    %v1181 = vmul.f32 %v1179, 0.5
    %v1182 = vmul.f32 %v1180, 0.5
    %v1183 = vmul.f32 %v1161, %v1181
    %v1184 = vmul.f32 %v1164, %v1182
    %v1185 = vpack.c.bf16 %v1184, %v1183
    %v1186 = vlaneseq
    %v1187 = vshrl.u32 %v1186, 7
    %v1188 = vsub.s32 0, %v1187
    %v1189 = vrot.slane %v687, %v1188
    %1190 = vrot.lane.b32.xlu0 %v1119, 64
    %v1191 = vpop.permute.xlu0 %1190
    %1192 = vrot.lane.b32.xlu0 %v1120, 64
    %v1193 = vpop.permute.xlu0 %1192
    %v1195 = vsel %vm586, %v1185, 0
    %v1198 = vsel %vm586, %v1191, 0
    %v1201 = vsel %vm586, %v1193, 0
    %1203 = vmatprep.subr.bf16.mxu0 0
    %1204 = vmatpush1.bf16.xpose.msra.mxu0 %v1198
    %1205 = vmatprep.subr.bf16.mxu0 0
    %1206 = vmatpush1.bf16.xpose.msra.mxu0 %v1201
    %1207 = vmatprep.subr.bf16.mxu0 0
    %1208 = vmatpush1.bf16.xpose.msra.mxu0 0
    %1209 = vmatprep.subr.bf16.mxu0 0
    %1210 = vmatpush1.bf16.xpose.msra.mxu0 0
    %1211 = vmatprep.subr.bf16.mxu0 0
    %1212 = vmatpush1.bf16.xpose.msra.mxu0 0
    %1213 = vmatprep.subr.bf16.mxu0 0
    %1214 = vmatpush1.bf16.xpose.msra.mxu0 0
    %1215 = vmatprep.subr.bf16.mxu0 0
    %1216 = vmatpush1.bf16.xpose.msra.mxu0 0
    %1217 = vmatprep.subr.bf16.mxu0 0
    %1218 = vmatpush1.bf16.xpose.msra.mxu0 0
    %1219 = vmatprep.subr.bf16.mxu0 0
    %1220 = vmatpush1.bf16.xpose.msra.mxu0 0
    %1221 = vmatprep.subr.bf16.mxu0 0
    %1222 = vmatpush1.bf16.xpose.msra.mxu0 0
    %1223 = vmatprep.subr.bf16.mxu0 0
    %1224 = vmatpush1.bf16.xpose.msra.mxu0 0
    %1225 = vmatprep.subr.bf16.mxu0 0
    %1226 = vmatpush1.bf16.xpose.msra.mxu0 0
    %1227 = vmatprep.subr.bf16.mxu0 0
    %1228 = vmatpush1.bf16.xpose.msra.mxu0 0
    %1229 = vmatprep.subr.bf16.mxu0 0
    %1230 = vmatpush1.bf16.xpose.msra.mxu0 0
    %1231 = vmatprep.subr.bf16.mxu0 0
    %1232 = vmatpush1.bf16.xpose.msra.mxu0 0
    %1233 = vmatprep.subr.bf16.mxu0 0
    %1234 = vmatpush1.bf16.xpose.msra.mxu0 0
    %1235 = vmatprep.mubr.bf16.mxu0 0
    %1236 = vmatmul.mubr.bf16.gmra.mrb[0].mxu0 %v1195
    %v1237 = vpop.f32.mrb[0].mxu0
    %v1238 = vadd.f32 %v1189, %v1237
    %v1239 = vpop.f32.mrb[0].mxu0
    %v1240 = vpop.f32.mrb[0].mxu0
    %v1241 = vadd.f32 %v1189, %v1240
    %v1242 = vpop.f32.mrb[0].mxu0
    %1243 = vdwg.mxu0
    %v1244 = vadd.f32 %v1238, %v1108
    %v1245 = vadd.f32 %v1241, %v1109
    %v1246 = vsel %vm28, %v1244, 0.0
    %1247 = vadd.xlane.f32.xlu0 %v1246
    %v1248 = vpop.xlane.xlu0 %1247
    %v1249 = vsel %vm28, %v1245, 0.0
    %1250 = vadd.xlane.f32.xlu0 %v1249
    %v1251 = vpop.xlane.xlu0 %1250
    %v1252 = vmul.f32 %v1248, %v35
    %v1253 = vmul.f32 %v1251, %v35
    %v1254 = vsub.f32 %v1244, %v1252
    %v1255 = vsub.f32 %v1245, %v1253
    %v1256 = vmul.f32 %v1254, %v1254
    %v1257 = vmul.f32 %v1255, %v1255
    %v1258 = vsel %vm28, %v1256, 0.0
    %1259 = vadd.xlane.f32.xlu0 %v1258
    %v1260 = vpop.xlane.xlu0 %1259
    %v1261 = vsel %vm28, %v1257, 0.0
    %1262 = vadd.xlane.f32.xlu0 %v1261
    %v1263 = vpop.xlane.xlu0 %1262
    %v1264 = vmul.f32 %v1260, %v35
    %v1265 = vmul.f32 %v1263, %v35
    %v1266 = vadd.f32 %v1264, 1e-12
    %v1267 = vadd.f32 %v1265, 1e-12
    %v1268 = vrsqrt.pop %v1266
    %v1269 = vrsqrt.pop %v1267
    %v1270 = vmul.f32 %v1254, %v1268
    %v1271 = vmul.f32 %v1255, %v1269
    %v1272 = vlaneseq
    %v1273 = vshrl.u32 %v1272, 7
    %v1274 = vsub.s32 0, %v1273
    %v1275 = vrot.slane %v688, %v1274
    %v1276 = vmul.f32 %v1270, %v1275
    %v1277 = vmul.f32 %v1271, %v1275
    %v1278 = vlaneseq
    %v1279 = vshrl.u32 %v1278, 7
    %v1280 = vsub.s32 0, %v1279
    %v1281 = vrot.slane %v689, %v1280
    %v1282 = vadd.f32 %v1276, %v1281
    %v1283 = vadd.f32 %v1277, %v1281
    %v1285 = vrot.slane %v1283, 7
    %vm1287 = vcmask 1040384
    %v1288 = vsel %vm1287, %v1282, %v1285
    %v1289 = vpack.c.bf16 %v1288, %v1288
    %v1290 = vld [vmem:[%s4] sm:$0xf]
    %v1291 = vld [vmem:[%s4 + $0x4] sm:$0xf]
    %v1292 = vld [vmem:[%s4 + $0x8] sm:$0xf]
    %v1293 = vld [vmem:[%s4 + $0xc] sm:$0xf]
    %v1294 = vld [vmem:[%s2 + $0x2] sm:$0x1]
    %v1295 = vlaneseq
    %v1296 = vshrl.u32 %v1295, 7
    %v1297 = vsub.s32 0, %v1296
    %v1298 = vrot.slane %v1294, %v1297
    %v1303 = vunpack.c.l.b16 %v1290
    %v1304 = vunpack.c.l.b16 %v1291
    %v1305 = vunpack.c.l.b16 %v1292
    %v1306 = vunpack.c.l.b16 %v1293
    %v1307 = vpack.c.b16 %v1304, %v1303
    %v1308 = vpack.c.b16 %v1306, %v1305
    %v1312 = vsel %vm28, %v1289, 0
    %1314 = vmatprep.subr.bf16.mxu0 0
    %1315 = vmatpush1.bf16.msra.mxu0 %v1307
    %1316 = vmatprep.subr.bf16.mxu0 0
    %1317 = vmatpush1.bf16.msra.mxu0 %v1308
    %1318 = vmatprep.subr.bf16.mxu0 0
    %1319 = vmatpush1.bf16.msra.mxu0 0
    %1320 = vmatprep.subr.bf16.mxu0 0
    %1321 = vmatpush1.bf16.msra.mxu0 0
    %1322 = vmatprep.subr.bf16.mxu0 0
    %1323 = vmatpush1.bf16.msra.mxu0 0
    %1324 = vmatprep.subr.bf16.mxu0 0
    %1325 = vmatpush1.bf16.msra.mxu0 0
    %1326 = vmatprep.subr.bf16.mxu0 0
    %1327 = vmatpush1.bf16.msra.mxu0 0
    %1328 = vmatprep.subr.bf16.mxu0 0
    %1329 = vmatpush1.bf16.msra.mxu0 0
    %1330 = vmatprep.subr.bf16.mxu0 0
    %1331 = vmatpush1.bf16.msra.mxu0 0
    %1332 = vmatprep.subr.bf16.mxu0 0
    %1333 = vmatpush1.bf16.msra.mxu0 0
    %1334 = vmatprep.subr.bf16.mxu0 0
    %1335 = vmatpush1.bf16.msra.mxu0 0
    %1336 = vmatprep.subr.bf16.mxu0 0
    %1337 = vmatpush1.bf16.msra.mxu0 0
    %1338 = vmatprep.subr.bf16.mxu0 0
    %1339 = vmatpush1.bf16.msra.mxu0 0
    %1340 = vmatprep.subr.bf16.mxu0 0
    %1341 = vmatpush1.bf16.msra.mxu0 0
    %1342 = vmatprep.subr.bf16.mxu0 0
    %1343 = vmatpush1.bf16.msra.mxu0 0
    %1344 = vmatprep.subr.bf16.mxu0 0
    %1345 = vmatpush1.bf16.msra.mxu0 0
    %1346 = vmatprep.mubr.bf16.mxu0 0
    %1347 = vmatmul.mubr.bf16.gmra.mrb[0].mxu0 %v1312
    %v1348 = vpop.f32.mrb[0].mxu0
    %v1349 = vadd.f32 %v1298, %v1348
    %v1350 = vpop.f32.mrb[0].mxu0
    %v1351 = vpop.f32.mrb[0].mxu0
    %v1352 = vpop.f32.mrb[0].mxu0
    %1353 = vdwg.mxu0
    %v1354 = vtanh.pop %v1349
    %v1355 = vpack.c.bf16 %v1354, %v1354
    %v1356 = vld [vmem:[%s2 + $0x3] sm:$0x1]
    %v1357 = vlaneseq
    %v1358 = vshrl.u32 %v1357, 7
    %v1359 = vsub.s32 0, %v1358
    %v1360 = vrot.slane %v1356, %v1359
    %1361 = vrot.lane.b32.xlu0 %v1307, 96
    %v1362 = vpop.permute.xlu0 %1361
    %1363 = vrot.lane.b32.xlu0 %v1308, 96
    %v1364 = vpop.permute.xlu0 %1363
    %v1368 = vsel %vm28, %v1355, 0
    %1370 = vmatprep.subr.bf16.mxu0 0
    %1371 = vmatpush1.bf16.msra.mxu0 %v1362
    %1372 = vmatprep.subr.bf16.mxu0 0
    %1373 = vmatpush1.bf16.msra.mxu0 %v1364
    %1374 = vmatprep.subr.bf16.mxu0 0
    %1375 = vmatpush1.bf16.msra.mxu0 0
    %1376 = vmatprep.subr.bf16.mxu0 0
    %1377 = vmatpush1.bf16.msra.mxu0 0
    %1378 = vmatprep.subr.bf16.mxu0 0
    %1379 = vmatpush1.bf16.msra.mxu0 0
    %1380 = vmatprep.subr.bf16.mxu0 0
    %1381 = vmatpush1.bf16.msra.mxu0 0
    %1382 = vmatprep.subr.bf16.mxu0 0
    %1383 = vmatpush1.bf16.msra.mxu0 0
    %1384 = vmatprep.subr.bf16.mxu0 0
    %1385 = vmatpush1.bf16.msra.mxu0 0
    %1386 = vmatprep.subr.bf16.mxu0 0
    %1387 = vmatpush1.bf16.msra.mxu0 0
    %1388 = vmatprep.subr.bf16.mxu0 0
    %1389 = vmatpush1.bf16.msra.mxu0 0
    %1390 = vmatprep.subr.bf16.mxu0 0
    %1391 = vmatpush1.bf16.msra.mxu0 0
    %1392 = vmatprep.subr.bf16.mxu0 0
    %1393 = vmatpush1.bf16.msra.mxu0 0
    %1394 = vmatprep.subr.bf16.mxu0 0
    %1395 = vmatpush1.bf16.msra.mxu0 0
    %1396 = vmatprep.subr.bf16.mxu0 0
    %1397 = vmatpush1.bf16.msra.mxu0 0
    %1398 = vmatprep.subr.bf16.mxu0 0
    %1399 = vmatpush1.bf16.msra.mxu0 0
    %1400 = vmatprep.subr.bf16.mxu0 0
    %1401 = vmatpush1.bf16.msra.mxu0 0
    %1402 = vmatprep.mubr.bf16.mxu0 0
    %1403 = vmatmul.mubr.bf16.gmra.mrb[0].mxu0 %v1368
    %v1404 = vpop.f32.mrb[0].mxu0
    %v1405 = vadd.f32 %v1360, %v1404
    %v1406 = vpop.f32.mrb[0].mxu0
    %v1407 = vpop.f32.mrb[0].mxu0
    %v1408 = vpop.f32.mrb[0].mxu0
    %1409 = vdwg.mxu0
    %v1410 = vxor.u32 %v1405, 2147483648
    %v1411 = vmul.f32 %v1410, 1.442695
    %v1412 = vpow.pop %v1411
    %v1413 = vadd.f32 %v1412, 1.0
    %v1414 = vrcp.pop %v1413
    %v1415 = vmul.f32 1.0, %v1414
    %vm1416 = vcmask 25600
    %1417 = vst.msk [vmem:[#allocation3] sm:$0x3] %vm1416, %v1415
    // Predicated region
    $region22: #{custom_model_forward.1} parent=1 // pred_check
      _
    $region23: #{custom_model_forward.1} parent=1 // pred_check_branch
      %1419 = sbr.rel (0) target = $region25
    $region24: #{custom_model_forward.1} parent=1 // pred_region
      %s1421 = ssub.s32 32, 32
      %1422 = vsyncadd [#allocation4], %s1421
      %s1424 = sshll.u32 [#allocation3], 4
      %s1425 = int_to_ptr.vmem [resolvable:$true] %s1424
      %1427 = dma.vmem_to_hbm [thread:$0]  %s1425, 32, %s5, [#allocation4]
    $region25: #{custom_model_forward.1} parent=1 // pred_fallthru
      _
    // Predicated region
    $region26: #{custom_model_forward.1} parent=1 // pred_check
      _
    $region27: #{custom_model_forward.1} parent=1 // pred_check_branch
      %1429 = sbr.rel (0) target = $region29
    $region28: #{custom_model_forward.1} parent=1 // pred_region
      %1430 = dma.done [#allocation4], 32
    $region29: #{custom_model_forward.1} parent=1 // pred_fallthru
      _
    %1431 = vsyncpa [#allocation4], 1

</llo_original>
